<compile_context>
chip_gen: v6e
topology: v6e:2x2x1
jax: 0.10.0
libtpu: 0.0.40
codegen_flags: <defaults>
</compile_context>

<pallas_src>
import functools
import math

import jax
import jax.numpy as jnp
from jax import lax
from jax.experimental import pallas as pl
from jax.experimental.pallas import tpu as pltpu


def _conv_attn_kernel(w_sref, qp_ref, kp_ref, v_ref, o_ref, qk_ref, kcat_ref, *,
                      seq_len, head_dim, block_q, kq, kk,
                      softmax_scale, causal):
  """Grid = (batch, head, q_tile).

  qp_ref  : (1, 1, S + KQ - 1, D)   Q with KQ-1 zero rows prepended.
  kp_ref  : (1, 1, S + KK - 1, D)   K zero-padded pad_k / (KK-1-pad_k).
  v_ref   : (1, 1, S, D)
  kcat_ref: (KQ, S, D) VMEM scratch with the conv-folded K planes ("Ktilde"),
            built once per (batch, head).  NOTE: correctness relies on the
            q-tile axis being iterated sequentially within each (b, h) — it is
            the innermost, "arbitrary" grid axis; do not mark it parallel.
  """
  S, D, TQ = seq_len, head_dim, block_q
  h = pl.program_id(1)
  qi = pl.program_id(2)

  # ---- Fold the KK key taps into K once per (batch, head). ------------------
  #   Ktilde_i[k, :] = sum_j W[h, i, j] * Kpad[k + j, :]
  # f32 accumulation in vregs, one full-width (S, D) store per tap plane.
  @pl.when(qi == 0)
  def _build():
    k_full = kp_ref[0, 0].astype(jnp.float32)           # (S + KK - 1, D)
    for i in range(kq):
      acc = None
      for j in range(kk):
        w_ij = w_sref[h, i * kk + j]                     # scalar tap from SMEM
        term = w_ij * k_full[j:j + S, :]
        acc = term if acc is None else acc + term
      kcat_ref[i] = acc.astype(kcat_ref.dtype)

  # ---- Convolved scores for this query tile: KQ MXU matmuls, f32 accumulate.
  #   S_conv[q0 + r, k] = sum_i Qpad[q0 + r + i, :] . Ktilde_i[k, :]
  q0 = pl.multiple_of(qi * TQ, TQ)
  sc = None
  for i in range(kq):
    q_piece = qp_ref[0, 0, pl.ds(q0 + i, TQ), :]         # (TQ, D)
    part = lax.dot_general(q_piece, kcat_ref[i],
                           (((1,), (1,)), ((), ())),
                           preferred_element_type=jnp.float32)   # (TQ, S)
    sc = part if sc is None else sc + part

  qk_ref[0, 0] = sc.astype(qk_ref.dtype)

  # ---- Softmax over the (resident) key axis + PV matmul. --------------------
  scores = sc * softmax_scale
  if causal:
    rows = q0 + lax.broadcasted_iota(jnp.int32, (TQ, 1), 0)      # global q idx
    cols = lax.broadcasted_iota(jnp.int32, (1, S), 1)
    scores = jnp.where(rows >= cols, scores, -1.0e6)
  m = jnp.max(scores, axis=-1, keepdims=True)
  p = jnp.exp(scores - m)
  l = jnp.sum(p, axis=-1, keepdims=True)
  o = lax.dot_general(p.astype(v_ref.dtype), v_ref[0, 0],
                      (((1,), (0,)), ((), ())),
                      preferred_element_type=jnp.float32)        # (TQ, D)
  inv_l = pl.reciprocal(l, approx=True)                          # EUP slot
  inv_l = inv_l * (2.0 - l * inv_l)                              # Newton refine
  o_ref[0, 0] = (o * inv_l).astype(o_ref.dtype)


def _vmem_capacity_bytes():
  try:
    cap = getattr(pltpu.get_tpu_info(), "vmem_capacity_bytes", None)
    if cap:
      return int(cap)
  except Exception:
    pass
  return 64 << 20            # conservative fallback (v7x-sized)


def _plan(seq_len, head_dim, kq, kk, itemsize, block_q=None):
  """Generation-aware q-tile size + VMEM limit."""
  S, D = seq_len, head_dim
  cap = _vmem_capacity_bytes()

  def footprint(tq):
    inputs = 2 * ((S + kq - 1) + (S + kk - 1) + S) * D * itemsize  # Qp,Kp,V (x2 buffers)
    scratch = kq * S * D * itemsize                                # Ktilde planes
    outputs = 2 * tq * (D + S) * itemsize                          # O + QK (x2 buffers)
    temps = 6 * tq * S * 4                                         # live f32 (TQ,S) temps
    return inputs + scratch + outputs + temps + (2 << 20)          # + internal scratch

  if block_q is None:
    candidates = [c for c in (512, 256, 128, 64, 32, 16, 8) if S % c == 0]
    if not candidates:
      candidates = [S]
    block_q = candidates[-1]
    for c in candidates:                        # biggest tile that fits w/ headroom
      if footprint(c) + (8 << 20) <= cap:
        block_q = c
        break

  est = footprint(block_q)
  # 128-MiB chips (v5e/v6e): allow up to ~100 MiB; 64-MiB chips (v7x): headroom.
  ceiling = (100 << 20) if cap >= (128 << 20) else max(cap - (8 << 20), 32 << 20)
  vmem_limit = int(min(max(est + (6 << 20), 32 << 20), ceiling))
  return block_q, vmem_limit


def conv_attention_forward(Q, K, V, W, causal, softmax_scale,
                           block_q=None, qk_dtype=None):
  """Pallas wrapper. Q/K/V: (B,H,S,D), W: (H,KQ,KK). Returns (O, QK)."""
  B, H, S, D = Q.shape
  Hc, KQ, KK = W.shape
  assert Hc == H
  assert K.shape == Q.shape and V.shape == Q.shape
  pad_q = KQ - 1
  pad_k = (KK - 1) // 2
  qk_dtype = Q.dtype if qk_dtype is None else jnp.dtype(qk_dtype)

  itemsize = jnp.dtype(Q.dtype).itemsize
  block_q, vmem_limit = _plan(S, D, KQ, KK, itemsize, block_q)
  assert S % block_q == 0, (S, block_q)
  num_q_tiles = S // block_q

  # Zero padding folded into the inputs: removes all in-kernel halo handling.
  Qp = jnp.pad(Q, ((0, 0), (0, 0), (pad_q, 0), (0, 0)))
  Kp = jnp.pad(K, ((0, 0), (0, 0), (pad_k, KK - 1 - pad_k), (0, 0)))
  W_flat = W.reshape(H, KQ * KK).astype(jnp.float32)

  kernel = functools.partial(
      _conv_attn_kernel,
      seq_len=S, head_dim=D, block_q=block_q, kq=KQ, kk=KK,
      softmax_scale=float(softmax_scale), causal=bool(causal))

  grid_spec = pltpu.PrefetchScalarGridSpec(
      num_scalar_prefetch=0,
      grid=(B, H, num_q_tiles),
      in_specs=[
          pl.BlockSpec(memory_space=pltpu.MemorySpace.SMEM),               # W
          pl.BlockSpec((1, 1, S + pad_q, D), lambda b, h, qi: (b, h, 0, 0)),   # Qp
          pl.BlockSpec((1, 1, S + KK - 1, D), lambda b, h, qi: (b, h, 0, 0)),  # Kp
          pl.BlockSpec((1, 1, S, D), lambda b, h, qi: (b, h, 0, 0)),           # V
      ],
      out_specs=[
          pl.BlockSpec((1, 1, block_q, D), lambda b, h, qi: (b, h, qi, 0)),  # O
          pl.BlockSpec((1, 1, block_q, S), lambda b, h, qi: (b, h, qi, 0)),  # QK
      ],
      scratch_shapes=[
          pltpu.VMEM((KQ, S, D), Q.dtype),          # conv-folded K planes
      ],
  )

  flops = 2 * B * H * S * S * (KQ * D + D)          # QK-conv + PV matmuls
  transcendentals = B * H * S * S                   # exp
  bytes_accessed = (itemsize * 4 * B * H * S * D
                    + jnp.dtype(qk_dtype).itemsize * B * H * S * S
                    + W_flat.size * 4)

  O, QK = pl.pallas_call(
      kernel,
      out_shape=(jax.ShapeDtypeStruct((B, H, S, D), Q.dtype),
                 jax.ShapeDtypeStruct((B, H, S, S), qk_dtype)),
      grid_spec=grid_spec,
      compiler_params=pltpu.CompilerParams(
          dimension_semantics=("parallel", "parallel", "arbitrary"),
          vmem_limit_bytes=vmem_limit),
      cost_estimate=pl.CostEstimate(
          flops=flops, transcendentals=transcendentals,
          bytes_accessed=bytes_accessed),
  )(W_flat, Qp, Kp, V)
  return O, QK


def ref_conv_attention(Q, K, V, W, causal, softmax_scale):
  """Pure-JAX reference of the same math (for validation)."""
  B, H, S, D = Q.shape
  _, KQ, KK = W.shape
  pad_q = KQ - 1
  pad_k = (KK - 1) // 2
  s_raw = jnp.einsum('bhqd,bhkd->bhqk', Q, K, precision=lax.Precision.HIGHEST)
  s_pad = jnp.pad(s_raw, ((0, 0), (0, 0), (pad_q, 0), (pad_k, KK - 1 - pad_k)))
  sc = jnp.zeros_like(s_raw)
  for i in range(KQ):
    for j in range(KK):
      sc = sc + W[None, :, i, j, None, None] * s_pad[:, :, i:i + S, j:j + S]
  scores = sc * softmax_scale
  if causal:
    tri = jnp.tril(jnp.ones((S, S), bool))
    scores = jnp.where(tri, scores, -1.0e6)
  P = jax.nn.softmax(scores, axis=-1)
  O = jnp.einsum('bhqk,bhkd->bhqd', P, V, precision=lax.Precision.HIGHEST)
  return O, sc


if __name__ == "__main__":
  # Small shapes consistent with the module: channels == num_heads.
  B, H, S, D = 2, 4, 64, 32
  kernel_size = 3
  softmax_scale = 1.0 / math.sqrt(D)

  key = jax.random.PRNGKey(0)
  k_q, k_k, k_v, k_w = jax.random.split(key, 4)
  Q = jax.random.normal(k_q, (B, H, S, D), jnp.float32)
  K = jax.random.normal(k_k, (B, H, S, D), jnp.float32)
  V = jax.random.normal(k_v, (B, H, S, D), jnp.float32)

  # Module init is zeros with 1.0 at the kernel center; a small deterministic
  # perturbation is added so every conv tap is exercised by the check.
  W = jnp.zeros((H, kernel_size, kernel_size), jnp.float32)
  W = W.at[:, kernel_size // 2, kernel_size // 2].set(1.0)
  W = W + 0.1 * jax.random.normal(k_w, W.shape, jnp.float32)

  for causal in (True, False):
    O, QK = conv_attention_forward(Q, K, V, W, causal, softmax_scale)
    jax.block_until_ready((O, QK))
    O_ref, QK_ref = ref_conv_attention(Q, K, V, W, causal, softmax_scale)
    assert jnp.allclose(QK, QK_ref, atol=1e-3, rtol=1e-3), (
        "QK mismatch", causal, float(jnp.max(jnp.abs(QK - QK_ref))))
    assert jnp.allclose(O, O_ref, atol=2e-3, rtol=2e-3), (
        "O mismatch", causal, float(jnp.max(jnp.abs(O - O_ref))))

  print("KERNEL_OK")
</pallas_src>

<mosaic_0001>
module attributes {stable_mosaic.version = 11 : i64} {
  func.func @_conv_attn_kernel(%arg0: i32, %arg1: i32, %arg2: i32, %arg3: memref<4x9xf32, #tpu.memory_space<smem>>, %arg4: memref<1x1x66x32xf32, #tpu.memory_space<vmem>>, %arg5: memref<1x1x66x32xf32, #tpu.memory_space<vmem>>, %arg6: memref<1x1x64x32xf32, #tpu.memory_space<vmem>>, %arg7: memref<1x1x64x32xf32, #tpu.memory_space<vmem>>, %arg8: memref<1x1x64x64xf32, #tpu.memory_space<vmem>>, %arg9: memref<3x64x32xf32, #tpu.memory_space<vmem>>) attributes {dimension_semantics = [#tpu.dimension_semantics<parallel>, #tpu.dimension_semantics<parallel>, #tpu.dimension_semantics<arbitrary>], iteration_bounds = array<i64: 2, 4, 1>, scalar_prefetch = 0 : i64, scratch_operands = 1 : i64, tpu.core_type = #tpu.core_type<tc>, window_params = [{transform_indices = @transform_0, window_bounds = array<i64: 4, 9>}, {transform_indices = @transform_1, window_bounds = array<i64: 1, 1, 66, 32>}, {transform_indices = @transform_2, window_bounds = array<i64: 1, 1, 66, 32>}, {transform_indices = @transform_3, window_bounds = array<i64: 1, 1, 64, 32>}, {transform_indices = @transform_4, window_bounds = array<i64: 1, 1, 64, 32>}, {transform_indices = @transform_5, window_bounds = array<i64: 1, 1, 64, 64>}]} {
    %c0_i32 = arith.constant 0 : i32
    %0 = arith.cmpi eq, %arg2, %c0_i32 : i32
    %1 = arith.extui %0 : i1 to i32
    %c0_i32_0 = arith.constant 0 : i32
    %2 = arith.cmpi ne, %1, %c0_i32_0 : i32
    scf.if %2 {
      %c0_37 = arith.constant 0 : index
      %c0_38 = arith.constant 0 : index
      %c0_39 = arith.constant 0 : index
      %c0_40 = arith.constant 0 : index
      %62 = vector.load %arg5[%c0_37, %c0_38, %c0_39, %c0_40] : memref<1x1x66x32xf32, #tpu.memory_space<vmem>>, vector<1x1x66x32xf32>
      %63 = vector.shape_cast %62 : vector<1x1x66x32xf32> to vector<66x32xf32>
      %64 = arith.index_cast %arg1 : i32 to index
      %c0_41 = arith.constant 0 : index
      %65 = memref.load %arg3[%64, %c0_41] : memref<4x9xf32, #tpu.memory_space<smem>>
      %66 = vector.extract_strided_slice %63 {offsets = [0, 0], sizes = [64, 32], strides = [1, 1]} : vector<66x32xf32> to vector<64x32xf32>
      %67 = vector.broadcast %65 : f32 to vector<64x32xf32>
      %68 = arith.mulf %67, %66 : vector<64x32xf32>
      %69 = arith.index_cast %arg1 : i32 to index
      %c1_42 = arith.constant 1 : index
      %70 = memref.load %arg3[%69, %c1_42] : memref<4x9xf32, #tpu.memory_space<smem>>
      %71 = vector.extract_strided_slice %63 {offsets = [1, 0], sizes = [64, 32], strides = [1, 1]} : vector<66x32xf32> to vector<64x32xf32>
      %72 = vector.broadcast %70 : f32 to vector<64x32xf32>
      %73 = arith.mulf %72, %71 : vector<64x32xf32>
      %74 = arith.addf %68, %73 : vector<64x32xf32>
      %75 = arith.index_cast %arg1 : i32 to index
      %c2_43 = arith.constant 2 : index
      %76 = memref.load %arg3[%75, %c2_43] : memref<4x9xf32, #tpu.memory_space<smem>>
      %77 = vector.extract_strided_slice %63 {offsets = [2, 0], sizes = [64, 32], strides = [1, 1]} : vector<66x32xf32> to vector<64x32xf32>
      %78 = vector.broadcast %76 : f32 to vector<64x32xf32>
      %79 = arith.mulf %78, %77 : vector<64x32xf32>
      %80 = arith.addf %74, %79 : vector<64x32xf32>
      %c0_44 = arith.constant 0 : index
      %c0_45 = arith.constant 0 : index
      %c0_46 = arith.constant 0 : index
      %81 = vector.load %arg9[%c0_44, %c0_45, %c0_46] : memref<3x64x32xf32, #tpu.memory_space<vmem>>, vector<1x64x32xf32>
      %82 = vector.shape_cast %81 : vector<1x64x32xf32> to vector<64x32xf32>
      %83 = vector.shape_cast %80 : vector<64x32xf32> to vector<1x64x32xf32>
      tpu.vector_store %arg9[%c0_44, %c0_45, %c0_46], %83 {strides = array<i32>} : memref<3x64x32xf32, #tpu.memory_space<vmem>>, vector<1x64x32xf32>,
      %84 = arith.index_cast %arg1 : i32 to index
      %c3 = arith.constant 3 : index
      %85 = memref.load %arg3[%84, %c3] : memref<4x9xf32, #tpu.memory_space<smem>>
      %86 = vector.extract_strided_slice %63 {offsets = [0, 0], sizes = [64, 32], strides = [1, 1]} : vector<66x32xf32> to vector<64x32xf32>
      %87 = vector.broadcast %85 : f32 to vector<64x32xf32>
      %88 = arith.mulf %87, %86 : vector<64x32xf32>
      %89 = arith.index_cast %arg1 : i32 to index
      %c4 = arith.constant 4 : index
      %90 = memref.load %arg3[%89, %c4] : memref<4x9xf32, #tpu.memory_space<smem>>
      %91 = vector.extract_strided_slice %63 {offsets = [1, 0], sizes = [64, 32], strides = [1, 1]} : vector<66x32xf32> to vector<64x32xf32>
      %92 = vector.broadcast %90 : f32 to vector<64x32xf32>
      %93 = arith.mulf %92, %91 : vector<64x32xf32>
      %94 = arith.addf %88, %93 : vector<64x32xf32>
      %95 = arith.index_cast %arg1 : i32 to index
      %c5 = arith.constant 5 : index
      %96 = memref.load %arg3[%95, %c5] : memref<4x9xf32, #tpu.memory_space<smem>>
      %97 = vector.extract_strided_slice %63 {offsets = [2, 0], sizes = [64, 32], strides = [1, 1]} : vector<66x32xf32> to vector<64x32xf32>
      %98 = vector.broadcast %96 : f32 to vector<64x32xf32>
      %99 = arith.mulf %98, %97 : vector<64x32xf32>
      %100 = arith.addf %94, %99 : vector<64x32xf32>
      %c1_47 = arith.constant 1 : index
      %c0_48 = arith.constant 0 : index
      %c0_49 = arith.constant 0 : index
      %101 = vector.load %arg9[%c1_47, %c0_48, %c0_49] : memref<3x64x32xf32, #tpu.memory_space<vmem>>, vector<1x64x32xf32>
      %102 = vector.shape_cast %101 : vector<1x64x32xf32> to vector<64x32xf32>
      %103 = vector.shape_cast %100 : vector<64x32xf32> to vector<1x64x32xf32>
      tpu.vector_store %arg9[%c1_47, %c0_48, %c0_49], %103 {strides = array<i32>} : memref<3x64x32xf32, #tpu.memory_space<vmem>>, vector<1x64x32xf32>,
      %104 = arith.index_cast %arg1 : i32 to index
      %c6 = arith.constant 6 : index
      %105 = memref.load %arg3[%104, %c6] : memref<4x9xf32, #tpu.memory_space<smem>>
      %106 = vector.extract_strided_slice %63 {offsets = [0, 0], sizes = [64, 32], strides = [1, 1]} : vector<66x32xf32> to vector<64x32xf32>
      %107 = vector.broadcast %105 : f32 to vector<64x32xf32>
      %108 = arith.mulf %107, %106 : vector<64x32xf32>
      %109 = arith.index_cast %arg1 : i32 to index
      %c7 = arith.constant 7 : index
      %110 = memref.load %arg3[%109, %c7] : memref<4x9xf32, #tpu.memory_space<smem>>
      %111 = vector.extract_strided_slice %63 {offsets = [1, 0], sizes = [64, 32], strides = [1, 1]} : vector<66x32xf32> to vector<64x32xf32>
      %112 = vector.broadcast %110 : f32 to vector<64x32xf32>
      %113 = arith.mulf %112, %111 : vector<64x32xf32>
      %114 = arith.addf %108, %113 : vector<64x32xf32>
      %115 = arith.index_cast %arg1 : i32 to index
      %c8 = arith.constant 8 : index
      %116 = memref.load %arg3[%115, %c8] : memref<4x9xf32, #tpu.memory_space<smem>>
      %117 = vector.extract_strided_slice %63 {offsets = [2, 0], sizes = [64, 32], strides = [1, 1]} : vector<66x32xf32> to vector<64x32xf32>
      %118 = vector.broadcast %116 : f32 to vector<64x32xf32>
      %119 = arith.mulf %118, %117 : vector<64x32xf32>
      %120 = arith.addf %114, %119 : vector<64x32xf32>
      %c2_50 = arith.constant 2 : index
      %c0_51 = arith.constant 0 : index
      %c0_52 = arith.constant 0 : index
      %121 = vector.load %arg9[%c2_50, %c0_51, %c0_52] : memref<3x64x32xf32, #tpu.memory_space<vmem>>, vector<1x64x32xf32>
      %122 = vector.shape_cast %121 : vector<1x64x32xf32> to vector<64x32xf32>
      %123 = vector.shape_cast %120 : vector<64x32xf32> to vector<1x64x32xf32>
      tpu.vector_store %arg9[%c2_50, %c0_51, %c0_52], %123 {strides = array<i32>} : memref<3x64x32xf32, #tpu.memory_space<vmem>>, vector<1x64x32xf32>,
    } else {
    }
    %c64_i32 = arith.constant 64 : i32
    %3 = arith.muli %arg2, %c64_i32 : i32
    %4 = tpu.assume_multiple %3, 64 : i32
    %c0_i32_1 = arith.constant 0 : i32
    %5 = arith.addi %4, %c0_i32_1 : i32
    %c0 = arith.constant 0 : index
    %c0_2 = arith.constant 0 : index
    %6 = arith.index_cast %5 : i32 to index
    %c0_3 = arith.constant 0 : index
    %7 = vector.load %arg4[%c0, %c0_2, %6, %c0_3] : memref<1x1x66x32xf32, #tpu.memory_space<vmem>>, vector<1x1x64x32xf32>
    %8 = vector.shape_cast %7 : vector<1x1x64x32xf32> to vector<64x32xf32>
    %c0_4 = arith.constant 0 : index
    %c0_5 = arith.constant 0 : index
    %c0_6 = arith.constant 0 : index
    %9 = vector.load %arg9[%c0_4, %c0_5, %c0_6] : memref<3x64x32xf32, #tpu.memory_space<vmem>>, vector<1x64x32xf32>
    %10 = vector.shape_cast %9 : vector<1x64x32xf32> to vector<64x32xf32>
    %cst = arith.constant dense<0.000000e+00> : vector<64x64xf32>
    %11 = tpu.matmul %8, %10, %cst {dimension_numbers = #tpu.dot_dimension_numbers<[1], [1], [0], [0], [0, 0, 1, 0], [], []>} : vector<64x32xf32>, vector<64x32xf32>, vector<64x64xf32> -> vector<64x64xf32>
    %c1_i32 = arith.constant 1 : i32
    %12 = arith.addi %4, %c1_i32 : i32
    %c0_7 = arith.constant 0 : index
    %c0_8 = arith.constant 0 : index
    %13 = arith.index_cast %12 : i32 to index
    %c0_9 = arith.constant 0 : index
    %14 = vector.load %arg4[%c0_7, %c0_8, %13, %c0_9] : memref<1x1x66x32xf32, #tpu.memory_space<vmem>>, vector<1x1x64x32xf32>
    %15 = vector.shape_cast %14 : vector<1x1x64x32xf32> to vector<64x32xf32>
    %c1 = arith.constant 1 : index
    %c0_10 = arith.constant 0 : index
    %c0_11 = arith.constant 0 : index
    %16 = vector.load %arg9[%c1, %c0_10, %c0_11] : memref<3x64x32xf32, #tpu.memory_space<vmem>>, vector<1x64x32xf32>
    %17 = vector.shape_cast %16 : vector<1x64x32xf32> to vector<64x32xf32>
    %cst_12 = arith.constant dense<0.000000e+00> : vector<64x64xf32>
    %18 = tpu.matmul %15, %17, %cst_12 {dimension_numbers = #tpu.dot_dimension_numbers<[1], [1], [0], [0], [0, 0, 1, 0], [], []>} : vector<64x32xf32>, vector<64x32xf32>, vector<64x64xf32> -> vector<64x64xf32>
    %19 = arith.addf %11, %18 : vector<64x64xf32>
    %c2_i32 = arith.constant 2 : i32
    %20 = arith.addi %4, %c2_i32 : i32
    %c0_13 = arith.constant 0 : index
    %c0_14 = arith.constant 0 : index
    %21 = arith.index_cast %20 : i32 to index
    %c0_15 = arith.constant 0 : index
    %22 = vector.load %arg4[%c0_13, %c0_14, %21, %c0_15] : memref<1x1x66x32xf32, #tpu.memory_space<vmem>>, vector<1x1x64x32xf32>
    %23 = vector.shape_cast %22 : vector<1x1x64x32xf32> to vector<64x32xf32>
    %c2 = arith.constant 2 : index
    %c0_16 = arith.constant 0 : index
    %c0_17 = arith.constant 0 : index
    %24 = vector.load %arg9[%c2, %c0_16, %c0_17] : memref<3x64x32xf32, #tpu.memory_space<vmem>>, vector<1x64x32xf32>
    %25 = vector.shape_cast %24 : vector<1x64x32xf32> to vector<64x32xf32>
    %cst_18 = arith.constant dense<0.000000e+00> : vector<64x64xf32>
    %26 = tpu.matmul %23, %25, %cst_18 {dimension_numbers = #tpu.dot_dimension_numbers<[1], [1], [0], [0], [0, 0, 1, 0], [], []>} : vector<64x32xf32>, vector<64x32xf32>, vector<64x64xf32> -> vector<64x64xf32>
    %27 = arith.addf %19, %26 : vector<64x64xf32>
    %c0_19 = arith.constant 0 : index
    %c0_20 = arith.constant 0 : index
    %c0_21 = arith.constant 0 : index
    %c0_22 = arith.constant 0 : index
    %28 = vector.load %arg8[%c0_19, %c0_20, %c0_21, %c0_22] : memref<1x1x64x64xf32, #tpu.memory_space<vmem>>, vector<1x1x64x64xf32>
    %29 = vector.shape_cast %28 : vector<1x1x64x64xf32> to vector<64x64xf32>
    %30 = vector.shape_cast %27 : vector<64x64xf32> to vector<1x1x64x64xf32>
    tpu.vector_store %arg8[%c0_19, %c0_20, %c0_21, %c0_22], %30 {strides = array<i32>} : memref<1x1x64x64xf32, #tpu.memory_space<vmem>>, vector<1x1x64x64xf32>,
    %cst_23 = arith.constant 0.176776692 : f32
    %31 = vector.broadcast %cst_23 : f32 to vector<64x64xf32>
    %32 = arith.mulf %27, %31 : vector<64x64xf32>
    %33 = tpu.iota {dimensions = array<i32: 0>} : vector<64x1xi32>
    %34 = vector.broadcast %4 : i32 to vector<64x1xi32>
    %35 = arith.addi %34, %33 : vector<64x1xi32>
    %36 = tpu.iota {dimensions = array<i32: 1>} : vector<1x64xi32>
    %37 = vector.broadcast %35 : vector<64x1xi32> to vector<64x64xi32>
    %38 = vector.broadcast %36 : vector<1x64xi32> to vector<64x64xi32>
    %39 = arith.cmpi sge, %37, %38 : vector<64x64xi32>
    %cst_24 = arith.constant -1.000000e+06 : f32
    %40 = vector.broadcast %cst_24 : f32 to vector<64x64xf32>
    %41 = arith.select %39, %32, %40 : vector<64x64xi1>, vector<64x64xf32>
    %cst_25 = arith.constant dense<0xFF800000> : vector<64xf32>
    %42 = vector.multi_reduction <maximumf>, %41, %cst_25 [1] : vector<64x64xf32> to vector<64xf32>
    %43 = vector.shape_cast %42 : vector<64xf32> to vector<64x1xf32>
    %44 = vector.broadcast %43 : vector<64x1xf32> to vector<64x64xf32>
    %45 = arith.subf %41, %44 : vector<64x64xf32>
    %46 = math.exp %45 : vector<64x64xf32>
    %cst_26 = arith.constant dense<0.000000e+00> : vector<64xf32>
    %47 = vector.multi_reduction <add>, %46, %cst_26 [1] : vector<64x64xf32> to vector<64xf32>
    %48 = vector.shape_cast %47 : vector<64xf32> to vector<64x1xf32>
    %c0_27 = arith.constant 0 : index
    %c0_28 = arith.constant 0 : index
    %c0_29 = arith.constant 0 : index
    %c0_30 = arith.constant 0 : index
    %49 = vector.load %arg6[%c0_27, %c0_28, %c0_29, %c0_30] : memref<1x1x64x32xf32, #tpu.memory_space<vmem>>, vector<1x1x64x32xf32>
    %50 = vector.shape_cast %49 : vector<1x1x64x32xf32> to vector<64x32xf32>
    %cst_31 = arith.constant dense<0.000000e+00> : vector<64x32xf32>
    %51 = tpu.matmul %46, %50, %cst_31 {dimension_numbers = #tpu.dot_dimension_numbers<[1], [0], [0], [1], [0, 0, 1, 1], [], []>} : vector<64x64xf32>, vector<64x32xf32>, vector<64x32xf32> -> vector<64x32xf32>
    %52 = tpu.reciprocal %48 {approx = true} : vector<64x1xf32> -> vector<64x1xf32>
    %53 = arith.mulf %48, %52 : vector<64x1xf32>
    %cst_32 = arith.constant 2.000000e+00 : f32
    %54 = vector.broadcast %cst_32 : f32 to vector<64x1xf32>
    %55 = arith.subf %54, %53 : vector<64x1xf32>
    %56 = arith.mulf %52, %55 : vector<64x1xf32>
    %57 = vector.broadcast %56 : vector<64x1xf32> to vector<64x32xf32>
    %58 = arith.mulf %51, %57 : vector<64x32xf32>
    %c0_33 = arith.constant 0 : index
    %c0_34 = arith.constant 0 : index
    %c0_35 = arith.constant 0 : index
    %c0_36 = arith.constant 0 : index
    %59 = vector.load %arg7[%c0_33, %c0_34, %c0_35, %c0_36] : memref<1x1x64x32xf32, #tpu.memory_space<vmem>>, vector<1x1x64x32xf32>
    %60 = vector.shape_cast %59 : vector<1x1x64x32xf32> to vector<64x32xf32>
    %61 = vector.shape_cast %58 : vector<64x32xf32> to vector<1x1x64x32xf32>
    tpu.vector_store %arg7[%c0_33, %c0_34, %c0_35, %c0_36], %61 {strides = array<i32>} : memref<1x1x64x32xf32, #tpu.memory_space<vmem>>, vector<1x1x64x32xf32>,
    return
  }
  func.func @transform_0(%arg0: i32, %arg1: i32, %arg2: i32) -> (i32, i32) {
    %c0_i32 = arith.constant 0 : i32
    %c0_i32_0 = arith.constant 0 : i32
    %c0_i32_1 = arith.constant 0 : i32
    return %c0_i32, %c0_i32_0 : i32, i32
  }
  func.func @transform_1(%arg0: i32, %arg1: i32, %arg2: i32) -> (i32, i32, i32, i32) {
    %c0_i32 = arith.constant 0 : i32
    %c0_i32_0 = arith.constant 0 : i32
    %c0_i32_1 = arith.constant 0 : i32
    return %arg0, %arg1, %c0_i32, %c0_i32_0 : i32, i32, i32, i32
  }
  func.func @transform_2(%arg0: i32, %arg1: i32, %arg2: i32) -> (i32, i32, i32, i32) {
    %c0_i32 = arith.constant 0 : i32
    %c0_i32_0 = arith.constant 0 : i32
    %c0_i32_1 = arith.constant 0 : i32
    return %arg0, %arg1, %c0_i32, %c0_i32_0 : i32, i32, i32, i32
  }
  func.func @transform_3(%arg0: i32, %arg1: i32, %arg2: i32) -> (i32, i32, i32, i32) {
    %c0_i32 = arith.constant 0 : i32
    %c0_i32_0 = arith.constant 0 : i32
    %c0_i32_1 = arith.constant 0 : i32
    return %arg0, %arg1, %c0_i32, %c0_i32_0 : i32, i32, i32, i32
  }
  func.func @transform_4(%arg0: i32, %arg1: i32, %arg2: i32) -> (i32, i32, i32, i32) {
    %c0_i32 = arith.constant 0 : i32
    %c0_i32_0 = arith.constant 0 : i32
    return %arg0, %arg1, %arg2, %c0_i32 : i32, i32, i32, i32
  }
  func.func @transform_5(%arg0: i32, %arg1: i32, %arg2: i32) -> (i32, i32, i32, i32) {
    %c0_i32 = arith.constant 0 : i32
    %c0_i32_0 = arith.constant 0 : i32
    return %arg0, %arg1, %arg2, %c0_i32 : i32, i32, i32, i32
  }
}

</mosaic_0001>

<llo_original>
// kernel: tpu_custom_call.1
$region0: #{tpu_custom_call.1}
  #allocation0 [shape = 'u32[]', space=smem, size = 0x4, offset = 0x4, fixed_abs, tag = 'smem constant byte address 0x4 - core index']
  #allocation1 [shape = 'u32[144,128]{1,0:T(1,128)}', space=vmem, size = 0x12000, scoped, tag = 'internal scratch']
  #allocation2 [shape = 'f32[3,64,32]{2,1,0:T(8,128)}', space=vmem, size = 0x18000, scoped, tag = 'scratch operand']
  %s0 = inlined_call_operand.vmem [shape: f32[4,9], index: 0, kind: input, shape index: {}]
  %s1 = inlined_call_operand.vmem [shape: f32[2,4,66,32], index: 1, kind: input, shape index: {}]
  %s2 = inlined_call_operand.vmem [shape: f32[2,4,66,32], index: 2, kind: input, shape index: {}]
  %s3 = inlined_call_operand.vmem [shape: f32[2,4,64,32], index: 3, kind: input, shape index: {}]
  %s4 = inlined_call_operand.vmem [shape: f32[2,4,64,32], index: 4, kind: output, shape index: {0}]
  %s5 = inlined_call_operand.hbm [shape: f32[2,4,64,64], index: 5, kind: output, shape index: {1}]
  %6 = xla_tuple %s4, %s5
  %s7 = sld [smem:[#allocation0]]
  $region65: #{tpu_custom_call.1} parent=0
    _
  %s9 = ssub.s32 1, %s7
  %s10 = scalar_select 0, %s9, %s7
  $region1: #{tpu_custom_call.1} parent=0
    #allocation3 [shape = 'u8[2048]{0}', space=smem, size = 0x800, scoped, tag = 'input window, operand 0, single buffered']
    #allocation4 [shape = 's32[2]{0}', space=sflag, size = 0x8, scoped, tag = 'scoped memory for tpu_custom_call.1']
    #allocation5 [shape = 's32[2]{0}', space=sflag, size = 0x8, scoped, tag = 'scoped memory for tpu_custom_call.1']
    #allocation6 [shape = 'u8[65536]{0}', space=vmem, size = 0x10000, scoped, tag = 'output window, operand 1']
    %11 = vsyncpa [#allocation5], 0
    %12 = vsyncpa [#allocation4], 0
    %s13 = scalar_lea.sflag [#allocation4], 1
    %14 = vsyncpa %s13, 0
    loop: start=0, step=1, limit=10
    $region2: #{tpu_custom_call.1} parent=1 // loop_pre_header
      _
    $region3: #{tpu_custom_call.1} parent=1 // loop_header
      %s16 = sphi 0, %s20
      %p17 = scmp.ge.s32.totalorder %s16, 10
      %s23 = sphi 0, %s42
      %s24 = sphi 0, %s38
      %s25 = sphi 0, %s34
      %s26 = sphi 0, %s23
      %s27 = sphi 0, %s24
      %s28 = sphi 0, %s25
      %s29 = sphi 0, %s26
      %s30 = sphi 0, %s27
      %s31 = sphi 0, %s28
      %s43 = sphi 0, %s43
      %s45 = sphi 0, %s43
      %s46 = sphi 0, %s45
      %s60 = sphi 0, %s46
      %s68 = sphi 0, %s70
      %s71 = sphi 0, %s68
      %s72 = sphi 0, %s71
      %s88 = sphi 0, %s72
      %s96 = sphi 0, %s98
      %s99 = sphi 0, %s96
      %s100 = sphi 0, %s99
      %s116 = sphi 0, %s100
      %s124 = sphi 0, %s126
      %s127 = sphi 0, %s124
      %s128 = sphi 0, %s127
      %s144 = sphi 0, %s128
      %s154 = sphi 0, %s156
      %s157 = sphi 0, %s154
      %s158 = sphi 0, %s157
      %s174 = sphi 0, %s158
      %s184 = sphi 0, %s186
      %s187 = sphi 0, %s184
      %s188 = sphi 0, %s187
      %s204 = sphi 0, %s188
    $region4: #{tpu_custom_call.1} parent=1 // loop_header_branch
      %19 = sbr.rel (%p17) target = $region8
    $region5: #{tpu_custom_call.1} parent=1 // loop_body
      %s21 = ssub.s32 %s16, 1
      %s22 = ssub.s32 %s16, 2
      %s32 = sadd.s32 1, %s25
      %p33 = scmp.ge.s32.totalorder %s32, 1
      %s34 = scalar_select %p33, 0, %s32
      %s35 = sadd.s32 1, %s24
      %s36 = scalar_select %p33, %s35, %s24
      %p37 = scmp.ge.s32.totalorder %s36, 4
      %s38 = scalar_select %p37, 0, %s36
      %s39 = sadd.s32 1, %s23
      %s40 = scalar_select %p37, %s39, %s23
      %p41 = scmp.ge.s32.totalorder %s40, 2
      %s42 = scalar_select %p41, 0, %s40
      %s44 = sadd.s32 %s43, 1
      %p47 = scmp.eq.s32.totalorder %s16, 7
      %p48 = scmp.ne.s32.totalorder %s43, %s45
      %p49 = scmp.eq.s32.totalorder %s16, 0
      %p50 = por %p48, %p49
      %p51 = scmp.ne.s32.totalorder %s43, %s45
      %p52 = scmp.eq.s32.totalorder %s21, 7
      %p53 = por %p51, %p52
      %p54 = scmp.ne.s32.totalorder %s45, %s46
      %p55 = scmp.eq.s32.totalorder %s21, 0
      %p56 = por %p54, %p55
      %p57 = scmp.ne.s32.totalorder %s45, %s46
      %p58 = scmp.eq.s32.totalorder %s22, 7
      %p59 = por %p57, %p58
      %p61 = scmp.ne.s32.totalorder %s46, %s60
      %p62 = scmp.eq.s32.totalorder %s22, 0
      %p63 = por %p61, %p62
      %s64 = ssub.s32 %s23, %s42
      %s65 = ssub.s32 %s24, %s38
      %s66 = sor.u32 %s64, %s65
      %p67 = scmp.eq.s32.totalorder %s66, 0
      %s69 = sadd.s32 %s68, 1
      %s70 = scalar_select %p67, %s68, %s69
      %p73 = pneg %p67
      %p74 = scmp.eq.s32.totalorder %s16, 7
      %p75 = por %p73, %p74
      %p76 = scmp.ne.s32.totalorder %s68, %s71
      %p77 = scmp.eq.s32.totalorder %s16, 0
      %p78 = por %p76, %p77
      %p79 = scmp.ne.s32.totalorder %s68, %s71
      %p80 = scmp.eq.s32.totalorder %s21, 7
      %p81 = por %p79, %p80
      %p82 = scmp.ne.s32.totalorder %s71, %s72
      %p83 = scmp.eq.s32.totalorder %s21, 0
      %p84 = por %p82, %p83
      %p85 = scmp.ne.s32.totalorder %s71, %s72
      %p86 = scmp.eq.s32.totalorder %s22, 7
      %p87 = por %p85, %p86
      %p89 = scmp.ne.s32.totalorder %s72, %s88
      %p90 = scmp.eq.s32.totalorder %s22, 0
      %p91 = por %p89, %p90
      %s92 = ssub.s32 %s23, %s42
      %s93 = ssub.s32 %s24, %s38
      %s94 = sor.u32 %s92, %s93
      %p95 = scmp.eq.s32.totalorder %s94, 0
      %s97 = sadd.s32 %s96, 1
      %s98 = scalar_select %p95, %s96, %s97
      %p101 = pneg %p95
      %p102 = scmp.eq.s32.totalorder %s16, 7
      %p103 = por %p101, %p102
      %p104 = scmp.ne.s32.totalorder %s96, %s99
      %p105 = scmp.eq.s32.totalorder %s16, 0
      %p106 = por %p104, %p105
      %p107 = scmp.ne.s32.totalorder %s96, %s99
      %p108 = scmp.eq.s32.totalorder %s21, 7
      %p109 = por %p107, %p108
      %p110 = scmp.ne.s32.totalorder %s99, %s100
      %p111 = scmp.eq.s32.totalorder %s21, 0
      %p112 = por %p110, %p111
      %p113 = scmp.ne.s32.totalorder %s99, %s100
      %p114 = scmp.eq.s32.totalorder %s22, 7
      %p115 = por %p113, %p114
      %p117 = scmp.ne.s32.totalorder %s100, %s116
      %p118 = scmp.eq.s32.totalorder %s22, 0
      %p119 = por %p117, %p118
      %s120 = ssub.s32 %s23, %s42
      %s121 = ssub.s32 %s24, %s38
      %s122 = sor.u32 %s120, %s121
      %p123 = scmp.eq.s32.totalorder %s122, 0
      %s125 = sadd.s32 %s124, 1
      %s126 = scalar_select %p123, %s124, %s125
      %p129 = pneg %p123
      %p130 = scmp.eq.s32.totalorder %s16, 7
      %p131 = por %p129, %p130
      %p132 = scmp.ne.s32.totalorder %s124, %s127
      %p133 = scmp.eq.s32.totalorder %s16, 0
      %p134 = por %p132, %p133
      %p135 = scmp.ne.s32.totalorder %s124, %s127
      %p136 = scmp.eq.s32.totalorder %s21, 7
      %p137 = por %p135, %p136
      %p138 = scmp.ne.s32.totalorder %s127, %s128
      %p139 = scmp.eq.s32.totalorder %s21, 0
      %p140 = por %p138, %p139
      %p141 = scmp.ne.s32.totalorder %s127, %s128
      %p142 = scmp.eq.s32.totalorder %s22, 7
      %p143 = por %p141, %p142
      %p145 = scmp.ne.s32.totalorder %s128, %s144
      %p146 = scmp.eq.s32.totalorder %s22, 0
      %p147 = por %p145, %p146
      %s148 = ssub.s32 %s23, %s42
      %s149 = ssub.s32 %s24, %s38
      %s150 = sor.u32 %s148, %s149
      %s151 = ssub.s32 %s25, %s34
      %s152 = sor.u32 %s150, %s151
      %p153 = scmp.eq.s32.totalorder %s152, 0
      %s155 = sadd.s32 %s154, 1
      %s156 = scalar_select %p153, %s154, %s155
      %p159 = pneg %p153
      %p160 = scmp.eq.s32.totalorder %s16, 7
      %p161 = por %p159, %p160
      %p162 = scmp.ne.s32.totalorder %s154, %s157
      %p163 = scmp.eq.s32.totalorder %s16, 0
      %p164 = por %p162, %p163
      %p165 = scmp.ne.s32.totalorder %s154, %s157
      %p166 = scmp.eq.s32.totalorder %s21, 7
      %p167 = por %p165, %p166
      %p168 = scmp.ne.s32.totalorder %s157, %s158
      %p169 = scmp.eq.s32.totalorder %s21, 0
      %p170 = por %p168, %p169
      %p171 = scmp.ne.s32.totalorder %s157, %s158
      %p172 = scmp.eq.s32.totalorder %s22, 7
      %p173 = por %p171, %p172
      %p175 = scmp.ne.s32.totalorder %s158, %s174
      %p176 = scmp.eq.s32.totalorder %s22, 0
      %p177 = por %p175, %p176
      %s178 = ssub.s32 %s23, %s42
      %s179 = ssub.s32 %s24, %s38
      %s180 = sor.u32 %s178, %s179
      %s181 = ssub.s32 %s25, %s34
      %s182 = sor.u32 %s180, %s181
      %p183 = scmp.eq.s32.totalorder %s182, 0
      %s185 = sadd.s32 %s184, 1
      %s186 = scalar_select %p183, %s184, %s185
      %p189 = pneg %p183
      %p190 = scmp.eq.s32.totalorder %s16, 7
      %p191 = por %p189, %p190
      %p192 = scmp.ne.s32.totalorder %s184, %s187
      %p193 = scmp.eq.s32.totalorder %s16, 0
      %p194 = por %p192, %p193
      %p195 = scmp.ne.s32.totalorder %s184, %s187
      %p196 = scmp.eq.s32.totalorder %s21, 7
      %p197 = por %p195, %p196
      %p198 = scmp.ne.s32.totalorder %s187, %s188
      %p199 = scmp.eq.s32.totalorder %s21, 0
      %p200 = por %p198, %p199
      %p201 = scmp.ne.s32.totalorder %s187, %s188
      %p202 = scmp.eq.s32.totalorder %s22, 7
      %p203 = por %p201, %p202
      %p205 = scmp.ne.s32.totalorder %s188, %s204
      %p206 = scmp.eq.s32.totalorder %s22, 0
      %p207 = por %p205, %p206
      %p208 = scmp.le.s32.totalorder 1, %s16
      %p209 = scmp.lt.s32.totalorder %s16, 9
      %p210 = pnand %p208, %p209
      %p211 = pneg %p210
      // Predicated region
      $region9: #{tpu_custom_call.1} parent=5 // pred_check
        _
      $region10: #{tpu_custom_call.1} parent=5 // pred_check_branch
        %213 = sbr.rel (%p210) target = $region12
      $region11: #{tpu_custom_call.1} parent=5 // pred_region
        %s214 = ssub.s32 %s16, 1
        // Predicated region
        $region13: #{tpu_custom_call.1} parent=11 // pred_check
          %p215 = pneg %p56
        $region14: #{tpu_custom_call.1} parent=11 // pred_check_branch
          %217 = sbr.rel (%p215) target = $region16
        $region15: #{tpu_custom_call.1} parent=11 // pred_region
          %s219 = ssub.s32 64, 64
          %220 = vsyncadd [#allocation5], %s219
          %s222 = sshll.u32 %s0, 4
          %s223 = int_to_ptr.vmem [resolvable:$true] %s222
          %225 = dma.vmem_to_smem %s223, 64, [#allocation3], [#allocation5]
        $region16: #{tpu_custom_call.1} parent=11 // pred_fallthru
          _
      $region12: #{tpu_custom_call.1} parent=5 // pred_fallthru
        _
      %p226 = scmp.lt.s32.totalorder %s16, 8
      // Predicated region
      $region17: #{tpu_custom_call.1} parent=5 // pred_check
        %p227 = pneg %p226
      $region18: #{tpu_custom_call.1} parent=5 // pred_check_branch
        %229 = sbr.rel (%p227) target = $region20
      $region19: #{tpu_custom_call.1} parent=5 // pred_region
        // Predicated region
        $region21: #{tpu_custom_call.1} parent=19 // pred_check
          %p230 = pneg %p78
        $region22: #{tpu_custom_call.1} parent=19 // pred_check_branch
          %232 = sbr.rel (%p230) target = $region24
        $region23: #{tpu_custom_call.1} parent=19 // pred_region
          %p233 = scmp.lt.s32.totalorder %s23, 1
          %s234 = scalar_select %p233, %s23, 1
          %p235 = scmp.lt.s32.totalorder %s24, 3
          %s236 = scalar_select %p235, %s24, 3
          %s237 = smul.addr %s236, 9
          %s238 = smul.addr %s234, 36
          %s239 = sadd.s32 %s237, %s238
          %s240 = smul.addr %s239, 8
          %s241 = scalar_lea.vmem %s1, %s240
        $region24: #{tpu_custom_call.1} parent=19 // pred_fallthru
          _
        // Predicated region
        $region25: #{tpu_custom_call.1} parent=19 // pred_check
          %p242 = pneg %p106
        $region26: #{tpu_custom_call.1} parent=19 // pred_check_branch
          %244 = sbr.rel (%p242) target = $region28
        $region27: #{tpu_custom_call.1} parent=19 // pred_region
          %p245 = scmp.lt.s32.totalorder %s23, 1
          %s246 = scalar_select %p245, %s23, 1
          %p247 = scmp.lt.s32.totalorder %s24, 3
          %s248 = scalar_select %p247, %s24, 3
          %s249 = smul.addr %s248, 9
          %s250 = smul.addr %s246, 36
          %s251 = sadd.s32 %s249, %s250
          %s252 = smul.addr %s251, 8
          %s253 = scalar_lea.vmem %s2, %s252
        $region28: #{tpu_custom_call.1} parent=19 // pred_fallthru
          _
        // Predicated region
        $region29: #{tpu_custom_call.1} parent=19 // pred_check
          %p254 = pneg %p134
        $region30: #{tpu_custom_call.1} parent=19 // pred_check_branch
          %256 = sbr.rel (%p254) target = $region32
        $region31: #{tpu_custom_call.1} parent=19 // pred_region
          %p257 = scmp.lt.s32.totalorder %s23, 1
          %s258 = scalar_select %p257, %s23, 1
          %p259 = scmp.lt.s32.totalorder %s24, 3
          %s260 = scalar_select %p259, %s24, 3
          %s261 = smul.addr %s260, 8
          %s262 = smul.addr %s258, 32
          %s263 = sadd.s32 %s261, %s262
          %s264 = smul.addr %s263, 8
          %s265 = scalar_lea.vmem %s3, %s264
        $region32: #{tpu_custom_call.1} parent=19 // pred_fallthru
          _
      $region20: #{tpu_custom_call.1} parent=5 // pred_fallthru
        _
      %p266 = scmp.le.s32.totalorder 1, %s16
      %p267 = scmp.lt.s32.totalorder %s16, 9
      %p268 = pnand %p266, %p267
      %p269 = pneg %p268
      // Predicated region
      $region33: #{tpu_custom_call.1} parent=5 // pred_check
        _
      $region34: #{tpu_custom_call.1} parent=5 // pred_check_branch
        %271 = sbr.rel (%p268) target = $region36
      $region35: #{tpu_custom_call.1} parent=5 // pred_region
        %s272 = ssub.s32 %s16, 1
        // Predicated region
        $region37: #{tpu_custom_call.1} parent=35 // pred_check
          %p273 = pneg %p56
        $region38: #{tpu_custom_call.1} parent=35 // pred_check_branch
          %275 = sbr.rel (%p273) target = $region40
        $region39: #{tpu_custom_call.1} parent=35 // pred_region
          %276 = dma.done [#allocation5], 64
        $region40: #{tpu_custom_call.1} parent=35 // pred_fallthru
          _
        %277 = sfence
        %p278 = pneg %p56
        %p279 = pneg %p53
        %p280 = scmp.lt.s32.totalorder %s26, 1
        %s281 = scalar_select %p280, %s26, 1
        %p282 = scmp.lt.s32.totalorder %s27, 3
        %s283 = scalar_select %p282, %s27, 3
        %s284 = smul.addr %s283, 9
        %s285 = smul.addr %s281, 36
        %s286 = sadd.s32 %s284, %s285
        %s287 = smul.addr %s286, 8
        %s288 = scalar_lea.vmem %s1, %s287
        %p289 = pneg %p84
        %p290 = pneg %p81
        %p291 = scmp.lt.s32.totalorder %s26, 1
        %s292 = scalar_select %p291, %s26, 1
        %p293 = scmp.lt.s32.totalorder %s27, 3
        %s294 = scalar_select %p293, %s27, 3
        %s295 = smul.addr %s294, 9
        %s296 = smul.addr %s292, 36
        %s297 = sadd.s32 %s295, %s296
        %s298 = smul.addr %s297, 8
        %s299 = scalar_lea.vmem %s2, %s298
        %p300 = pneg %p112
        %p301 = pneg %p109
        %p302 = scmp.lt.s32.totalorder %s26, 1
        %s303 = scalar_select %p302, %s26, 1
        %p304 = scmp.lt.s32.totalorder %s27, 3
        %s305 = scalar_select %p304, %s27, 3
        %s306 = smul.addr %s305, 8
        %s307 = smul.addr %s303, 32
        %s308 = sadd.s32 %s306, %s307
        %s309 = smul.addr %s308, 8
        %s310 = scalar_lea.vmem %s3, %s309
        %p311 = pneg %p140
        %p312 = pneg %p137
        %p313 = pneg %p170
        %p314 = pneg %p167
        %s315 = smul.u32 8, %s28
        %p316 = scmp.lt.s32.totalorder %s26, 1
        %s317 = scalar_select %p316, %s26, 1
        %p318 = scmp.lt.s32.totalorder %s27, 3
        %s319 = scalar_select %p318, %s27, 3
        %p320 = scmp.lt.s32.totalorder %s315, 7
        %s321 = scalar_select %p320, %s315, 7
        %s322 = smul.addr %s319, 8
        %s323 = sadd.s32 %s321, %s322
        %s324 = smul.addr %s317, 32
        %s325 = sadd.s32 %s323, %s324
        %s326 = smul.addr %s325, 8
        %s327 = scalar_lea.vmem %s4, %s326
        %p328 = pneg %p200
        %p329 = pneg %p197
        %s330 = sand.u32 %s187, 1
        %s331 = scalar_lea.sflag [#allocation4], %s330
        %s332 = sand.u32 %s187, 1
        %s333 = smul.addr %s332, 64
        %s334 = scalar_lea.vmem [#allocation6], %s333
        %p335 = scmp.lt.s32.totalorder %s26, 1
        %s336 = scalar_select %p335, %s26, 1
        %p337 = scmp.lt.s32.totalorder %s27, 3
        %s338 = scalar_select %p337, %s27, 3
        %s339 = smul.addr %s338, 9
        %s340 = smul.addr %s336, 36
        %s341 = sadd.s32 %s339, %s340
        %s342 = smul.addr %s341, 8
        %s343 = scalar_lea.vmem %s1, %s342
        %p344 = scmp.lt.s32.totalorder %s26, 1
        %s345 = scalar_select %p344, %s26, 1
        %p346 = scmp.lt.s32.totalorder %s27, 3
        %s347 = scalar_select %p346, %s27, 3
        %s348 = smul.addr %s347, 9
        %s349 = smul.addr %s345, 36
        %s350 = sadd.s32 %s348, %s349
        %s351 = smul.addr %s350, 8
        %s352 = scalar_lea.vmem %s2, %s351
        %p353 = scmp.lt.s32.totalorder %s26, 1
        %s354 = scalar_select %p353, %s26, 1
        %p355 = scmp.lt.s32.totalorder %s27, 3
        %s356 = scalar_select %p355, %s27, 3
        %s357 = smul.addr %s356, 8
        %s358 = smul.addr %s354, 32
        %s359 = sadd.s32 %s357, %s358
        %s360 = smul.addr %s359, 8
        %s361 = scalar_lea.vmem %s3, %s360
        %s362 = smul.u32 8, %s28
        %p363 = scmp.lt.s32.totalorder %s26, 1
        %s364 = scalar_select %p363, %s26, 1
        %p365 = scmp.lt.s32.totalorder %s27, 3
        %s366 = scalar_select %p365, %s27, 3
        %p367 = scmp.lt.s32.totalorder %s362, 7
        %s368 = scalar_select %p367, %s362, 7
        %s369 = smul.addr %s366, 8
        %s370 = sadd.s32 %s368, %s369
        %s371 = smul.addr %s364, 32
        %s372 = sadd.s32 %s370, %s371
        %s373 = smul.addr %s372, 8
        %s374 = scalar_lea.vmem %s4, %s373
        %s375 = smul.u32 8, %s28
        %s376 = smul.u32 8, %s28
        %p377 = scmp.eq.s32.totalorder %s28, 0
        // Predicated region
        $region41: #{tpu_custom_call.1} parent=35 // pred_check
          %p378 = pneg %p377
        $region42: #{tpu_custom_call.1} parent=35 // pred_check_branch
          %380 = sbr.rel (%p378) target = $region44
        $region43: #{tpu_custom_call.1} parent=35 // pred_region
          %v381 = vld [vmem:[%s352] sm:$0xff]
          %v382 = vld [vmem:[%s352 + $0x8] sm:$0xff]
          %v383 = vld [vmem:[%s352 + $0x10] sm:$0xff]
          %v384 = vld [vmem:[%s352 + $0x18] sm:$0xff]
          %v385 = vld [vmem:[%s352 + $0x20] sm:$0xff]
          %v386 = vld [vmem:[%s352 + $0x28] sm:$0xff]
          %v387 = vld [vmem:[%s352 + $0x30] sm:$0xff]
          %v388 = vld [vmem:[%s352 + $0x38] sm:$0xff]
          %v389 = vld [vmem:[%s352 + $0x40] sm:$0x3]
          %s390 = smul.u32 %s27, 128
          %s391 = sld [smem:[#allocation3 + %s390]]
          %v392 = vstv %s391
          %v393 = vmul.f32 %v392, %v381
          %v394 = vmul.f32 %v392, %v382
          %v395 = vmul.f32 %v392, %v383
          %v396 = vmul.f32 %v392, %v384
          %v397 = vmul.f32 %v392, %v385
          %v398 = vmul.f32 %v392, %v386
          %v399 = vmul.f32 %v392, %v387
          %v400 = vmul.f32 %v392, %v388
          %s401 = sadd.s32 %s390, 1
          %s402 = sld [smem:[#allocation3 + %s401]]
          %v403 = vstv %s402
          %v404 = vmul.f32 %v403, %v381
          %v405 = vmul.f32 %v403, %v382
          %v406 = vmul.f32 %v403, %v383
          %v407 = vmul.f32 %v403, %v384
          %v408 = vmul.f32 %v403, %v385
          %v409 = vmul.f32 %v403, %v386
          %v410 = vmul.f32 %v403, %v387
          %v411 = vmul.f32 %v403, %v388
          %v412 = vmul.f32 %v403, %v389
          %vm422 = vcmask 1046528
          %v423 = vrot.slane %v404, 1
          %v424 = vrot.slane %v405, 1
          %v425 = vsel %vm422, %v423, %v424
          %v426 = vrot.slane %v406, 1
          %v427 = vsel %vm422, %v424, %v426
          %v428 = vrot.slane %v407, 1
          %v429 = vsel %vm422, %v426, %v428
          %v430 = vrot.slane %v408, 1
          %v431 = vsel %vm422, %v428, %v430
          %v432 = vrot.slane %v409, 1
          %v433 = vsel %vm422, %v430, %v432
          %v434 = vrot.slane %v410, 1
          %v435 = vsel %vm422, %v432, %v434
          %v436 = vrot.slane %v411, 1
          %v437 = vsel %vm422, %v434, %v436
          %v438 = vrot.slane %v412, 1
          %v439 = vsel %vm422, %v436, %v438
          %v448 = vadd.f32 %v393, %v425
          %v449 = vadd.f32 %v394, %v427
          %v450 = vadd.f32 %v395, %v429
          %v451 = vadd.f32 %v396, %v431
          %v452 = vadd.f32 %v397, %v433
          %v453 = vadd.f32 %v398, %v435
          %v454 = vadd.f32 %v399, %v437
          %v455 = vadd.f32 %v400, %v439
          %s456 = sadd.s32 %s390, 2
          %s457 = sld [smem:[#allocation3 + %s456]]
          %v458 = vstv %s457
          %v459 = vmul.f32 %v458, %v381
          %v460 = vmul.f32 %v458, %v382
          %v461 = vmul.f32 %v458, %v383
          %v462 = vmul.f32 %v458, %v384
          %v463 = vmul.f32 %v458, %v385
          %v464 = vmul.f32 %v458, %v386
          %v465 = vmul.f32 %v458, %v387
          %v466 = vmul.f32 %v458, %v388
          %v467 = vmul.f32 %v458, %v389
          %vm477 = vcmask 1045504
          %v478 = vrot.slane %v459, 2
          %v479 = vrot.slane %v460, 2
          %v480 = vsel %vm477, %v478, %v479
          %v481 = vrot.slane %v461, 2
          %v482 = vsel %vm477, %v479, %v481
          %v483 = vrot.slane %v462, 2
          %v484 = vsel %vm477, %v481, %v483
          %v485 = vrot.slane %v463, 2
          %v486 = vsel %vm477, %v483, %v485
          %v487 = vrot.slane %v464, 2
          %v488 = vsel %vm477, %v485, %v487
          %v489 = vrot.slane %v465, 2
          %v490 = vsel %vm477, %v487, %v489
          %v491 = vrot.slane %v466, 2
          %v492 = vsel %vm477, %v489, %v491
          %v493 = vrot.slane %v467, 2
          %v494 = vsel %vm477, %v491, %v493
          %v503 = vadd.f32 %v448, %v480
          %v504 = vadd.f32 %v449, %v482
          %v505 = vadd.f32 %v450, %v484
          %v506 = vadd.f32 %v451, %v486
          %v507 = vadd.f32 %v452, %v488
          %v508 = vadd.f32 %v453, %v490
          %v509 = vadd.f32 %v454, %v492
          %v510 = vadd.f32 %v455, %v494
          %vm511 = vcmask 261120
          %512 = vst.msk [vmem:[#allocation2] sm:$0xff] %vm511, %v503
          %513 = vst.msk [vmem:[#allocation2 + $0x8] sm:$0xff] %vm511, %v504
          %514 = vst.msk [vmem:[#allocation2 + $0x10] sm:$0xff] %vm511, %v505
          %515 = vst.msk [vmem:[#allocation2 + $0x18] sm:$0xff] %vm511, %v506
          %516 = vst.msk [vmem:[#allocation2 + $0x20] sm:$0xff] %vm511, %v507
          %517 = vst.msk [vmem:[#allocation2 + $0x28] sm:$0xff] %vm511, %v508
          %518 = vst.msk [vmem:[#allocation2 + $0x30] sm:$0xff] %vm511, %v509
          %519 = vst.msk [vmem:[#allocation2 + $0x38] sm:$0xff] %vm511, %v510
          %s520 = sadd.s32 %s390, 3
          %s521 = sld [smem:[#allocation3 + %s520]]
          %v522 = vstv %s521
          %v523 = vmul.f32 %v522, %v381
          %v524 = vmul.f32 %v522, %v382
          %v525 = vmul.f32 %v522, %v383
          %v526 = vmul.f32 %v522, %v384
          %v527 = vmul.f32 %v522, %v385
          %v528 = vmul.f32 %v522, %v386
          %v529 = vmul.f32 %v522, %v387
          %v530 = vmul.f32 %v522, %v388
          %s531 = sadd.s32 %s390, 4
          %s532 = sld [smem:[#allocation3 + %s531]]
          %v533 = vstv %s532
          %v534 = vmul.f32 %v533, %v381
          %v535 = vmul.f32 %v533, %v382
          %v536 = vmul.f32 %v533, %v383
          %v537 = vmul.f32 %v533, %v384
          %v538 = vmul.f32 %v533, %v385
          %v539 = vmul.f32 %v533, %v386
          %v540 = vmul.f32 %v533, %v387
          %v541 = vmul.f32 %v533, %v388
          %v542 = vmul.f32 %v533, %v389
          %v552 = vrot.slane %v534, 1
          %v553 = vrot.slane %v535, 1
          %v554 = vsel %vm422, %v552, %v553
          %v555 = vrot.slane %v536, 1
          %v556 = vsel %vm422, %v553, %v555
          %v557 = vrot.slane %v537, 1
          %v558 = vsel %vm422, %v555, %v557
          %v559 = vrot.slane %v538, 1
          %v560 = vsel %vm422, %v557, %v559
          %v561 = vrot.slane %v539, 1
          %v562 = vsel %vm422, %v559, %v561
          %v563 = vrot.slane %v540, 1
          %v564 = vsel %vm422, %v561, %v563
          %v565 = vrot.slane %v541, 1
          %v566 = vsel %vm422, %v563, %v565
          %v567 = vrot.slane %v542, 1
          %v568 = vsel %vm422, %v565, %v567
          %v577 = vadd.f32 %v523, %v554
          %v578 = vadd.f32 %v524, %v556
          %v579 = vadd.f32 %v525, %v558
          %v580 = vadd.f32 %v526, %v560
          %v581 = vadd.f32 %v527, %v562
          %v582 = vadd.f32 %v528, %v564
          %v583 = vadd.f32 %v529, %v566
          %v584 = vadd.f32 %v530, %v568
          %s585 = sadd.s32 %s390, 5
          %s586 = sld [smem:[#allocation3 + %s585]]
          %v587 = vstv %s586
          %v588 = vmul.f32 %v587, %v381
          %v589 = vmul.f32 %v587, %v382
          %v590 = vmul.f32 %v587, %v383
          %v591 = vmul.f32 %v587, %v384
          %v592 = vmul.f32 %v587, %v385
          %v593 = vmul.f32 %v587, %v386
          %v594 = vmul.f32 %v587, %v387
          %v595 = vmul.f32 %v587, %v388
          %v596 = vmul.f32 %v587, %v389
          %v606 = vrot.slane %v588, 2
          %v607 = vrot.slane %v589, 2
          %v608 = vsel %vm477, %v606, %v607
          %v609 = vrot.slane %v590, 2
          %v610 = vsel %vm477, %v607, %v609
          %v611 = vrot.slane %v591, 2
          %v612 = vsel %vm477, %v609, %v611
          %v613 = vrot.slane %v592, 2
          %v614 = vsel %vm477, %v611, %v613
          %v615 = vrot.slane %v593, 2
          %v616 = vsel %vm477, %v613, %v615
          %v617 = vrot.slane %v594, 2
          %v618 = vsel %vm477, %v615, %v617
          %v619 = vrot.slane %v595, 2
          %v620 = vsel %vm477, %v617, %v619
          %v621 = vrot.slane %v596, 2
          %v622 = vsel %vm477, %v619, %v621
          %v631 = vadd.f32 %v577, %v608
          %v632 = vadd.f32 %v578, %v610
          %v633 = vadd.f32 %v579, %v612
          %v634 = vadd.f32 %v580, %v614
          %v635 = vadd.f32 %v581, %v616
          %v636 = vadd.f32 %v582, %v618
          %v637 = vadd.f32 %v583, %v620
          %v638 = vadd.f32 %v584, %v622
          %s639 = scalar_lea.vmem [#allocation2], 64
          %640 = vst.msk [vmem:[%s639] sm:$0xff] %vm511, %v631
          %641 = vst.msk [vmem:[%s639 + $0x8] sm:$0xff] %vm511, %v632
          %642 = vst.msk [vmem:[%s639 + $0x10] sm:$0xff] %vm511, %v633
          %643 = vst.msk [vmem:[%s639 + $0x18] sm:$0xff] %vm511, %v634
          %644 = vst.msk [vmem:[%s639 + $0x20] sm:$0xff] %vm511, %v635
          %645 = vst.msk [vmem:[%s639 + $0x28] sm:$0xff] %vm511, %v636
          %646 = vst.msk [vmem:[%s639 + $0x30] sm:$0xff] %vm511, %v637
          %647 = vst.msk [vmem:[%s639 + $0x38] sm:$0xff] %vm511, %v638
          %s648 = sadd.s32 %s390, 6
          %s649 = sld [smem:[#allocation3 + %s648]]
          %v650 = vstv %s649
          %v651 = vmul.f32 %v650, %v381
          %v652 = vmul.f32 %v650, %v382
          %v653 = vmul.f32 %v650, %v383
          %v654 = vmul.f32 %v650, %v384
          %v655 = vmul.f32 %v650, %v385
          %v656 = vmul.f32 %v650, %v386
          %v657 = vmul.f32 %v650, %v387
          %v658 = vmul.f32 %v650, %v388
          %s659 = sadd.s32 %s390, 7
          %s660 = sld [smem:[#allocation3 + %s659]]
          %v661 = vstv %s660
          %v662 = vmul.f32 %v661, %v381
          %v663 = vmul.f32 %v661, %v382
          %v664 = vmul.f32 %v661, %v383
          %v665 = vmul.f32 %v661, %v384
          %v666 = vmul.f32 %v661, %v385
          %v667 = vmul.f32 %v661, %v386
          %v668 = vmul.f32 %v661, %v387
          %v669 = vmul.f32 %v661, %v388
          %v670 = vmul.f32 %v661, %v389
          %v680 = vrot.slane %v662, 1
          %v681 = vrot.slane %v663, 1
          %v682 = vsel %vm422, %v680, %v681
          %v683 = vrot.slane %v664, 1
          %v684 = vsel %vm422, %v681, %v683
          %v685 = vrot.slane %v665, 1
          %v686 = vsel %vm422, %v683, %v685
          %v687 = vrot.slane %v666, 1
          %v688 = vsel %vm422, %v685, %v687
          %v689 = vrot.slane %v667, 1
          %v690 = vsel %vm422, %v687, %v689
          %v691 = vrot.slane %v668, 1
          %v692 = vsel %vm422, %v689, %v691
          %v693 = vrot.slane %v669, 1
          %v694 = vsel %vm422, %v691, %v693
          %v695 = vrot.slane %v670, 1
          %v696 = vsel %vm422, %v693, %v695
          %v705 = vadd.f32 %v651, %v682
          %v706 = vadd.f32 %v652, %v684
          %v707 = vadd.f32 %v653, %v686
          %v708 = vadd.f32 %v654, %v688
          %v709 = vadd.f32 %v655, %v690
          %v710 = vadd.f32 %v656, %v692
          %v711 = vadd.f32 %v657, %v694
          %v712 = vadd.f32 %v658, %v696
          %s713 = sadd.s32 %s390, 8
          %s714 = sld [smem:[#allocation3 + %s713]]
          %v715 = vstv %s714
          %v716 = vmul.f32 %v715, %v381
          %v717 = vmul.f32 %v715, %v382
          %v718 = vmul.f32 %v715, %v383
          %v719 = vmul.f32 %v715, %v384
          %v720 = vmul.f32 %v715, %v385
          %v721 = vmul.f32 %v715, %v386
          %v722 = vmul.f32 %v715, %v387
          %v723 = vmul.f32 %v715, %v388
          %v724 = vmul.f32 %v715, %v389
          %v734 = vrot.slane %v716, 2
          %v735 = vrot.slane %v717, 2
          %v736 = vsel %vm477, %v734, %v735
          %v737 = vrot.slane %v718, 2
          %v738 = vsel %vm477, %v735, %v737
          %v739 = vrot.slane %v719, 2
          %v740 = vsel %vm477, %v737, %v739
          %v741 = vrot.slane %v720, 2
          %v742 = vsel %vm477, %v739, %v741
          %v743 = vrot.slane %v721, 2
          %v744 = vsel %vm477, %v741, %v743
          %v745 = vrot.slane %v722, 2
          %v746 = vsel %vm477, %v743, %v745
          %v747 = vrot.slane %v723, 2
          %v748 = vsel %vm477, %v745, %v747
          %v749 = vrot.slane %v724, 2
          %v750 = vsel %vm477, %v747, %v749
          %v759 = vadd.f32 %v705, %v736
          %v760 = vadd.f32 %v706, %v738
          %v761 = vadd.f32 %v707, %v740
          %v762 = vadd.f32 %v708, %v742
          %v763 = vadd.f32 %v709, %v744
          %v764 = vadd.f32 %v710, %v746
          %v765 = vadd.f32 %v711, %v748
          %v766 = vadd.f32 %v712, %v750
          %s767 = scalar_lea.vmem [#allocation2], 128
          %768 = vst.msk [vmem:[%s767] sm:$0xff] %vm511, %v759
          %769 = vst.msk [vmem:[%s767 + $0x8] sm:$0xff] %vm511, %v760
          %770 = vst.msk [vmem:[%s767 + $0x10] sm:$0xff] %vm511, %v761
          %771 = vst.msk [vmem:[%s767 + $0x18] sm:$0xff] %vm511, %v762
          %772 = vst.msk [vmem:[%s767 + $0x20] sm:$0xff] %vm511, %v763
          %773 = vst.msk [vmem:[%s767 + $0x28] sm:$0xff] %vm511, %v764
          %774 = vst.msk [vmem:[%s767 + $0x30] sm:$0xff] %vm511, %v765
          %775 = vst.msk [vmem:[%s767 + $0x38] sm:$0xff] %vm511, %v766
        $region44: #{tpu_custom_call.1} parent=35 // pred_fallthru
          _
        %s776 = smul.u32 %s28, 64
        %s777 = scalar_lea.vmem %s343, %s776
        %v778 = vld [vmem:[%s777] sm:$0xff]
        %v779 = vld [vmem:[%s777 + $0x8] sm:$0xff]
        %v780 = vld [vmem:[%s777 + $0x10] sm:$0xff]
        %v781 = vld [vmem:[%s777 + $0x18] sm:$0xff]
        %v782 = vld [vmem:[%s777 + $0x20] sm:$0xff]
        %v783 = vld [vmem:[%s777 + $0x28] sm:$0xff]
        %v784 = vld [vmem:[%s777 + $0x30] sm:$0xff]
        %v785 = vld [vmem:[%s777 + $0x38] sm:$0xff]
        %v786 = vld [vmem:[#allocation2] sm:$0xff]
        %v787 = vld [vmem:[#allocation2 + $0x8] sm:$0xff]
        %v788 = vld [vmem:[#allocation2 + $0x10] sm:$0xff]
        %v789 = vld [vmem:[#allocation2 + $0x18] sm:$0xff]
        %v790 = vld [vmem:[#allocation2 + $0x20] sm:$0xff]
        %v791 = vld [vmem:[#allocation2 + $0x28] sm:$0xff]
        %v792 = vld [vmem:[#allocation2 + $0x30] sm:$0xff]
        %v793 = vld [vmem:[#allocation2 + $0x38] sm:$0xff]
        %s794 = sadd.s32 %s776, 1
        %s795 = scalar_lea.vmem %s343, %s794
        %v796 = vld [vmem:[%s795] sm:$0xff]
        %v797 = vld [vmem:[%s795 + $0x8] sm:$0xff]
        %v798 = vld [vmem:[%s795 + $0x10] sm:$0xff]
        %v799 = vld [vmem:[%s795 + $0x18] sm:$0xff]
        %v800 = vld [vmem:[%s795 + $0x20] sm:$0xff]
        %v801 = vld [vmem:[%s795 + $0x28] sm:$0xff]
        %v802 = vld [vmem:[%s795 + $0x30] sm:$0xff]
        %v803 = vld [vmem:[%s795 + $0x38] sm:$0xff]
        %s804 = scalar_lea.vmem [#allocation2], 64
        %v805 = vld [vmem:[%s804] sm:$0xff]
        %v806 = vld [vmem:[%s804 + $0x8] sm:$0xff]
        %v807 = vld [vmem:[%s804 + $0x10] sm:$0xff]
        %v808 = vld [vmem:[%s804 + $0x18] sm:$0xff]
        %v809 = vld [vmem:[%s804 + $0x20] sm:$0xff]
        %v810 = vld [vmem:[%s804 + $0x28] sm:$0xff]
        %v811 = vld [vmem:[%s804 + $0x30] sm:$0xff]
        %v812 = vld [vmem:[%s804 + $0x38] sm:$0xff]
        %vm813 = vcmask 261120
        %v815 = vsel %vm813, %v796, 0
        %v818 = vsel %vm813, %v797, 0
        %v821 = vsel %vm813, %v798, 0
        %v824 = vsel %vm813, %v799, 0
        %v827 = vsel %vm813, %v800, 0
        %v830 = vsel %vm813, %v801, 0
        %v833 = vsel %vm813, %v802, 0
        %v836 = vsel %vm813, %v803, 0
        %v839 = vsel %vm813, %v805, 0
        %v842 = vsel %vm813, %v806, 0
        %v845 = vsel %vm813, %v807, 0
        %v848 = vsel %vm813, %v808, 0
        %v851 = vsel %vm813, %v809, 0
        %v854 = vsel %vm813, %v810, 0
        %v857 = vsel %vm813, %v811, 0
        %v860 = vsel %vm813, %v812, 0
        %862 = vmatprep.subr.mxu0 0.0
        %863 = vmatpush1.xpose.msra.mxu0 0.0
        %864 = vmatprep.subr.mxu0 0.0
        %865 = vmatpush1.xpose.msra.mxu0 0.0
        %866 = vmatprep.subr.mxu0 0.0
        %867 = vmatpush1.xpose.msra.mxu0 0.0
        %868 = vmatprep.subr.mxu0 0.0
        %869 = vmatpush1.xpose.msra.mxu0 0.0
        %870 = vmatprep.subr.mxu0 0.0
        %871 = vmatpush1.xpose.msra.mxu0 0.0
        %872 = vmatprep.subr.mxu0 0.0
        %873 = vmatpush1.xpose.msra.mxu0 0.0
        %874 = vmatprep.subr.mxu0 0.0
        %875 = vmatpush1.xpose.msra.mxu0 0.0
        %876 = vmatprep.subr.mxu0 0.0
        %877 = vmatpush1.xpose.msra.mxu0 0.0
        %878 = vmatprep.subr.mxu0 0.0
        %879 = vmatpush1.xpose.msra.mxu0 %v860
        %880 = vmatprep.subr.mxu0 0.0
        %881 = vmatpush1.xpose.msra.mxu0 %v857
        %882 = vmatprep.subr.mxu0 0.0
        %883 = vmatpush1.xpose.msra.mxu0 %v854
        %884 = vmatprep.subr.mxu0 0.0
        %885 = vmatpush1.xpose.msra.mxu0 %v851
        %886 = vmatprep.subr.mxu0 0.0
        %887 = vmatpush1.xpose.msra.mxu0 %v848
        %888 = vmatprep.subr.mxu0 0.0
        %889 = vmatpush1.xpose.msra.mxu0 %v845
        %890 = vmatprep.subr.mxu0 0.0
        %891 = vmatpush1.xpose.msra.mxu0 %v842
        %892 = vmatprep.subr.mxu0 0.0
        %893 = vmatpush1.xpose.msra.mxu0 %v839
        %894 = vmatprep.subr.mxu0 0.0
        %895 = vmatpush2.xpose.msra.mxu0 0.0
        %896 = vmatprep.subr.mxu0 0.0
        %897 = vmatpush2.xpose.msra.mxu0 0.0
        %898 = vmatprep.subr.mxu0 0.0
        %899 = vmatpush2.xpose.msra.mxu0 0.0
        %900 = vmatprep.subr.mxu0 0.0
        %901 = vmatpush2.xpose.msra.mxu0 0.0
        %902 = vmatprep.subr.mxu0 0.0
        %903 = vmatpush2.xpose.msra.mxu0 0.0
        %904 = vmatprep.subr.mxu0 0.0
        %905 = vmatpush2.xpose.msra.mxu0 0.0
        %906 = vmatprep.subr.mxu0 0.0
        %907 = vmatpush2.xpose.msra.mxu0 0.0
        %908 = vmatprep.subr.mxu0 0.0
        %909 = vmatpush2.xpose.msra.mxu0 0.0
        %910 = vmatprep.subr.mxu0 0.0
        %911 = vmatpush2.xpose.msra.mxu0 0.0
        %912 = vmatprep.subr.mxu0 0.0
        %913 = vmatpush2.xpose.msra.mxu0 0.0
        %914 = vmatprep.subr.mxu0 0.0
        %915 = vmatpush2.xpose.msra.mxu0 0.0
        %916 = vmatprep.subr.mxu0 0.0
        %917 = vmatpush2.xpose.msra.mxu0 0.0
        %918 = vmatprep.subr.mxu0 0.0
        %919 = vmatpush2.xpose.msra.mxu0 0.0
        %920 = vmatprep.subr.mxu0 0.0
        %921 = vmatpush2.xpose.msra.mxu0 0.0
        %922 = vmatprep.subr.mxu0 0.0
        %923 = vmatpush2.xpose.msra.mxu0 0.0
        %924 = vmatprep.subr.mxu0 0.0
        %925 = vmatpush2.xpose.msra.mxu0 0.0
        %926 = vmatprep.mubr.f32.mxu0 0.0
        %927 = vmatmul.mubr.f32.gmra.mxu0 %v815
        %v928 = vpop.f32.mrf.mxu0
        %v929 = vadd.f32 0.0, %v928
        %v930 = vpop.f32.mrf.mxu0
        %931 = vmatprep.mubr.f32.mxu0 0.0
        %932 = vmatmul.mubr.f32.gmra.mxu0 %v818
        %v933 = vpop.f32.mrf.mxu0
        %v934 = vadd.f32 0.0, %v933
        %v935 = vpop.f32.mrf.mxu0
        %936 = vmatprep.mubr.f32.mxu0 0.0
        %937 = vmatmul.mubr.f32.gmra.mxu0 %v821
        %v938 = vpop.f32.mrf.mxu0
        %v939 = vadd.f32 0.0, %v938
        %v940 = vpop.f32.mrf.mxu0
        %941 = vmatprep.mubr.f32.mxu0 0.0
        %942 = vmatmul.mubr.f32.gmra.mxu0 %v824
        %v943 = vpop.f32.mrf.mxu0
        %v944 = vadd.f32 0.0, %v943
        %v945 = vpop.f32.mrf.mxu0
        %946 = vmatprep.mubr.f32.mxu0 0.0
        %947 = vmatmul.mubr.f32.gmra.mxu0 %v827
        %v948 = vpop.f32.mrf.mxu0
        %v949 = vadd.f32 0.0, %v948
        %v950 = vpop.f32.mrf.mxu0
        %951 = vmatprep.mubr.f32.mxu0 0.0
        %952 = vmatmul.mubr.f32.gmra.mxu0 %v830
        %v953 = vpop.f32.mrf.mxu0
        %v954 = vadd.f32 0.0, %v953
        %v955 = vpop.f32.mrf.mxu0
        %956 = vmatprep.mubr.f32.mxu0 0.0
        %957 = vmatmul.mubr.f32.gmra.mxu0 %v833
        %v958 = vpop.f32.mrf.mxu0
        %v959 = vadd.f32 0.0, %v958
        %v960 = vpop.f32.mrf.mxu0
        %961 = vmatprep.mubr.f32.mxu0 0.0
        %962 = vmatmul.mubr.f32.gmra.mxu0 %v836
        %v963 = vpop.f32.mrf.mxu0
        %v964 = vadd.f32 0.0, %v963
        %v965 = vpop.f32.mrf.mxu0
        %966 = vdwg.mxu0
        %v968 = vsel %vm813, %v778, 0
        %v971 = vsel %vm813, %v779, 0
        %v974 = vsel %vm813, %v780, 0
        %v977 = vsel %vm813, %v781, 0
        %v980 = vsel %vm813, %v782, 0
        %v983 = vsel %vm813, %v783, 0
        %v986 = vsel %vm813, %v784, 0
        %v989 = vsel %vm813, %v785, 0
        %v992 = vsel %vm813, %v786, 0
        %v995 = vsel %vm813, %v787, 0
        %v998 = vsel %vm813, %v788, 0
        %v1001 = vsel %vm813, %v789, 0
        %v1004 = vsel %vm813, %v790, 0
        %v1007 = vsel %vm813, %v791, 0
        %v1010 = vsel %vm813, %v792, 0
        %v1013 = vsel %vm813, %v793, 0
        %1015 = vmatprep.subr.mxu0 0.0
        %1016 = vmatpush1.xpose.msra.mxu0 0.0
        %1017 = vmatprep.subr.mxu0 0.0
        %1018 = vmatpush1.xpose.msra.mxu0 0.0
        %1019 = vmatprep.subr.mxu0 0.0
        %1020 = vmatpush1.xpose.msra.mxu0 0.0
        %1021 = vmatprep.subr.mxu0 0.0
        %1022 = vmatpush1.xpose.msra.mxu0 0.0
        %1023 = vmatprep.subr.mxu0 0.0
        %1024 = vmatpush1.xpose.msra.mxu0 0.0
        %1025 = vmatprep.subr.mxu0 0.0
        %1026 = vmatpush1.xpose.msra.mxu0 0.0
        %1027 = vmatprep.subr.mxu0 0.0
        %1028 = vmatpush1.xpose.msra.mxu0 0.0
        %1029 = vmatprep.subr.mxu0 0.0
        %1030 = vmatpush1.xpose.msra.mxu0 0.0
        %1031 = vmatprep.subr.mxu0 0.0
        %1032 = vmatpush1.xpose.msra.mxu0 %v1013
        %1033 = vmatprep.subr.mxu0 0.0
        %1034 = vmatpush1.xpose.msra.mxu0 %v1010
        %1035 = vmatprep.subr.mxu0 0.0
        %1036 = vmatpush1.xpose.msra.mxu0 %v1007
        %1037 = vmatprep.subr.mxu0 0.0
        %1038 = vmatpush1.xpose.msra.mxu0 %v1004
        %1039 = vmatprep.subr.mxu0 0.0
        %1040 = vmatpush1.xpose.msra.mxu0 %v1001
        %1041 = vmatprep.subr.mxu0 0.0
        %1042 = vmatpush1.xpose.msra.mxu0 %v998
        %1043 = vmatprep.subr.mxu0 0.0
        %1044 = vmatpush1.xpose.msra.mxu0 %v995
        %1045 = vmatprep.subr.mxu0 0.0
        %1046 = vmatpush1.xpose.msra.mxu0 %v992
        %1047 = vmatprep.subr.mxu0 0.0
        %1048 = vmatpush2.xpose.msra.mxu0 0.0
        %1049 = vmatprep.subr.mxu0 0.0
        %1050 = vmatpush2.xpose.msra.mxu0 0.0
        %1051 = vmatprep.subr.mxu0 0.0
        %1052 = vmatpush2.xpose.msra.mxu0 0.0
        %1053 = vmatprep.subr.mxu0 0.0
        %1054 = vmatpush2.xpose.msra.mxu0 0.0
        %1055 = vmatprep.subr.mxu0 0.0
        %1056 = vmatpush2.xpose.msra.mxu0 0.0
        %1057 = vmatprep.subr.mxu0 0.0
        %1058 = vmatpush2.xpose.msra.mxu0 0.0
        %1059 = vmatprep.subr.mxu0 0.0
        %1060 = vmatpush2.xpose.msra.mxu0 0.0
        %1061 = vmatprep.subr.mxu0 0.0
        %1062 = vmatpush2.xpose.msra.mxu0 0.0
        %1063 = vmatprep.subr.mxu0 0.0
        %1064 = vmatpush2.xpose.msra.mxu0 0.0
        %1065 = vmatprep.subr.mxu0 0.0
        %1066 = vmatpush2.xpose.msra.mxu0 0.0
        %1067 = vmatprep.subr.mxu0 0.0
        %1068 = vmatpush2.xpose.msra.mxu0 0.0
        %1069 = vmatprep.subr.mxu0 0.0
        %1070 = vmatpush2.xpose.msra.mxu0 0.0
        %1071 = vmatprep.subr.mxu0 0.0
        %1072 = vmatpush2.xpose.msra.mxu0 0.0
        %1073 = vmatprep.subr.mxu0 0.0
        %1074 = vmatpush2.xpose.msra.mxu0 0.0
        %1075 = vmatprep.subr.mxu0 0.0
        %1076 = vmatpush2.xpose.msra.mxu0 0.0
        %1077 = vmatprep.subr.mxu0 0.0
        %1078 = vmatpush2.xpose.msra.mxu0 0.0
        %1079 = vmatprep.mubr.f32.mxu0 0.0
        %1080 = vmatmul.mubr.f32.gmra.mxu0 %v968
        %v1081 = vpop.f32.mrf.mxu0
        %v1082 = vadd.f32 %v929, %v1081
        %v1083 = vpop.f32.mrf.mxu0
        %1084 = vmatprep.mubr.f32.mxu0 0.0
        %1085 = vmatmul.mubr.f32.gmra.mxu0 %v971
        %v1086 = vpop.f32.mrf.mxu0
        %v1087 = vadd.f32 %v934, %v1086
        %v1088 = vpop.f32.mrf.mxu0
        %1089 = vmatprep.mubr.f32.mxu0 0.0
        %1090 = vmatmul.mubr.f32.gmra.mxu0 %v974
        %v1091 = vpop.f32.mrf.mxu0
        %v1092 = vadd.f32 %v939, %v1091
        %v1093 = vpop.f32.mrf.mxu0
        %1094 = vmatprep.mubr.f32.mxu0 0.0
        %1095 = vmatmul.mubr.f32.gmra.mxu0 %v977
        %v1096 = vpop.f32.mrf.mxu0
        %v1097 = vadd.f32 %v944, %v1096
        %v1098 = vpop.f32.mrf.mxu0
        %1099 = vmatprep.mubr.f32.mxu0 0.0
        %1100 = vmatmul.mubr.f32.gmra.mxu0 %v980
        %v1101 = vpop.f32.mrf.mxu0
        %v1102 = vadd.f32 %v949, %v1101
        %v1103 = vpop.f32.mrf.mxu0
        %1104 = vmatprep.mubr.f32.mxu0 0.0
        %1105 = vmatmul.mubr.f32.gmra.mxu0 %v983
        %v1106 = vpop.f32.mrf.mxu0
        %v1107 = vadd.f32 %v954, %v1106
        %v1108 = vpop.f32.mrf.mxu0
        %1109 = vmatprep.mubr.f32.mxu0 0.0
        %1110 = vmatmul.mubr.f32.gmra.mxu0 %v986
        %v1111 = vpop.f32.mrf.mxu0
        %v1112 = vadd.f32 %v959, %v1111
        %v1113 = vpop.f32.mrf.mxu0
        %1114 = vmatprep.mubr.f32.mxu0 0.0
        %1115 = vmatmul.mubr.f32.gmra.mxu0 %v989
        %v1116 = vpop.f32.mrf.mxu0
        %v1117 = vadd.f32 %v964, %v1116
        %v1118 = vpop.f32.mrf.mxu0
        %1119 = vdwg.mxu0
        %s1120 = sadd.s32 %s776, 2
        %s1121 = scalar_lea.vmem %s343, %s1120
        %v1122 = vld [vmem:[%s1121] sm:$0xff]
        %v1123 = vld [vmem:[%s1121 + $0x8] sm:$0xff]
        %v1124 = vld [vmem:[%s1121 + $0x10] sm:$0xff]
        %v1125 = vld [vmem:[%s1121 + $0x18] sm:$0xff]
        %v1126 = vld [vmem:[%s1121 + $0x20] sm:$0xff]
        %v1127 = vld [vmem:[%s1121 + $0x28] sm:$0xff]
        %v1128 = vld [vmem:[%s1121 + $0x30] sm:$0xff]
        %v1129 = vld [vmem:[%s1121 + $0x38] sm:$0xff]
        %s1130 = scalar_lea.vmem [#allocation2], 128
        %v1131 = vld [vmem:[%s1130] sm:$0xff]
        %v1132 = vld [vmem:[%s1130 + $0x8] sm:$0xff]
        %v1133 = vld [vmem:[%s1130 + $0x10] sm:$0xff]
        %v1134 = vld [vmem:[%s1130 + $0x18] sm:$0xff]
        %v1135 = vld [vmem:[%s1130 + $0x20] sm:$0xff]
        %v1136 = vld [vmem:[%s1130 + $0x28] sm:$0xff]
        %v1137 = vld [vmem:[%s1130 + $0x30] sm:$0xff]
        %v1138 = vld [vmem:[%s1130 + $0x38] sm:$0xff]
        %v1140 = vsel %vm813, %v1122, 0
        %v1143 = vsel %vm813, %v1123, 0
        %v1146 = vsel %vm813, %v1124, 0
        %v1149 = vsel %vm813, %v1125, 0
        %v1152 = vsel %vm813, %v1126, 0
        %v1155 = vsel %vm813, %v1127, 0
        %v1158 = vsel %vm813, %v1128, 0
        %v1161 = vsel %vm813, %v1129, 0
        %v1164 = vsel %vm813, %v1131, 0
        %v1167 = vsel %vm813, %v1132, 0
        %v1170 = vsel %vm813, %v1133, 0
        %v1173 = vsel %vm813, %v1134, 0
        %v1176 = vsel %vm813, %v1135, 0
        %v1179 = vsel %vm813, %v1136, 0
        %v1182 = vsel %vm813, %v1137, 0
        %v1185 = vsel %vm813, %v1138, 0
        %1187 = vmatprep.subr.mxu0 0.0
        %1188 = vmatpush1.xpose.msra.mxu0 0.0
        %1189 = vmatprep.subr.mxu0 0.0
        %1190 = vmatpush1.xpose.msra.mxu0 0.0
        %1191 = vmatprep.subr.mxu0 0.0
        %1192 = vmatpush1.xpose.msra.mxu0 0.0
        %1193 = vmatprep.subr.mxu0 0.0
        %1194 = vmatpush1.xpose.msra.mxu0 0.0
        %1195 = vmatprep.subr.mxu0 0.0
        %1196 = vmatpush1.xpose.msra.mxu0 0.0
        %1197 = vmatprep.subr.mxu0 0.0
        %1198 = vmatpush1.xpose.msra.mxu0 0.0
        %1199 = vmatprep.subr.mxu0 0.0
        %1200 = vmatpush1.xpose.msra.mxu0 0.0
        %1201 = vmatprep.subr.mxu0 0.0
        %1202 = vmatpush1.xpose.msra.mxu0 0.0
        %1203 = vmatprep.subr.mxu0 0.0
        %1204 = vmatpush1.xpose.msra.mxu0 %v1185
        %1205 = vmatprep.subr.mxu0 0.0
        %1206 = vmatpush1.xpose.msra.mxu0 %v1182
        %1207 = vmatprep.subr.mxu0 0.0
        %1208 = vmatpush1.xpose.msra.mxu0 %v1179
        %1209 = vmatprep.subr.mxu0 0.0
        %1210 = vmatpush1.xpose.msra.mxu0 %v1176
        %1211 = vmatprep.subr.mxu0 0.0
        %1212 = vmatpush1.xpose.msra.mxu0 %v1173
        %1213 = vmatprep.subr.mxu0 0.0
        %1214 = vmatpush1.xpose.msra.mxu0 %v1170
        %1215 = vmatprep.subr.mxu0 0.0
        %1216 = vmatpush1.xpose.msra.mxu0 %v1167
        %1217 = vmatprep.subr.mxu0 0.0
        %1218 = vmatpush1.xpose.msra.mxu0 %v1164
        %1219 = vmatprep.subr.mxu0 0.0
        %1220 = vmatpush2.xpose.msra.mxu0 0.0
        %1221 = vmatprep.subr.mxu0 0.0
        %1222 = vmatpush2.xpose.msra.mxu0 0.0
        %1223 = vmatprep.subr.mxu0 0.0
        %1224 = vmatpush2.xpose.msra.mxu0 0.0
        %1225 = vmatprep.subr.mxu0 0.0
        %1226 = vmatpush2.xpose.msra.mxu0 0.0
        %1227 = vmatprep.subr.mxu0 0.0
        %1228 = vmatpush2.xpose.msra.mxu0 0.0
        %1229 = vmatprep.subr.mxu0 0.0
        %1230 = vmatpush2.xpose.msra.mxu0 0.0
        %1231 = vmatprep.subr.mxu0 0.0
        %1232 = vmatpush2.xpose.msra.mxu0 0.0
        %1233 = vmatprep.subr.mxu0 0.0
        %1234 = vmatpush2.xpose.msra.mxu0 0.0
        %1235 = vmatprep.subr.mxu0 0.0
        %1236 = vmatpush2.xpose.msra.mxu0 0.0
        %1237 = vmatprep.subr.mxu0 0.0
        %1238 = vmatpush2.xpose.msra.mxu0 0.0
        %1239 = vmatprep.subr.mxu0 0.0
        %1240 = vmatpush2.xpose.msra.mxu0 0.0
        %1241 = vmatprep.subr.mxu0 0.0
        %1242 = vmatpush2.xpose.msra.mxu0 0.0
        %1243 = vmatprep.subr.mxu0 0.0
        %1244 = vmatpush2.xpose.msra.mxu0 0.0
        %1245 = vmatprep.subr.mxu0 0.0
        %1246 = vmatpush2.xpose.msra.mxu0 0.0
        %1247 = vmatprep.subr.mxu0 0.0
        %1248 = vmatpush2.xpose.msra.mxu0 0.0
        %1249 = vmatprep.subr.mxu0 0.0
        %1250 = vmatpush2.xpose.msra.mxu0 0.0
        %1251 = vmatprep.mubr.f32.mxu0 0.0
        %1252 = vmatmul.mubr.f32.gmra.mxu0 %v1140
        %v1253 = vpop.f32.mrf.mxu0
        %v1254 = vadd.f32 0.0, %v1253
        %v1255 = vpop.f32.mrf.mxu0
        %1256 = vmatprep.mubr.f32.mxu0 0.0
        %1257 = vmatmul.mubr.f32.gmra.mxu0 %v1143
        %v1258 = vpop.f32.mrf.mxu0
        %v1259 = vadd.f32 0.0, %v1258
        %v1260 = vpop.f32.mrf.mxu0
        %1261 = vmatprep.mubr.f32.mxu0 0.0
        %1262 = vmatmul.mubr.f32.gmra.mxu0 %v1146
        %v1263 = vpop.f32.mrf.mxu0
        %v1264 = vadd.f32 0.0, %v1263
        %v1265 = vpop.f32.mrf.mxu0
        %1266 = vmatprep.mubr.f32.mxu0 0.0
        %1267 = vmatmul.mubr.f32.gmra.mxu0 %v1149
        %v1268 = vpop.f32.mrf.mxu0
        %v1269 = vadd.f32 0.0, %v1268
        %v1270 = vpop.f32.mrf.mxu0
        %1271 = vmatprep.mubr.f32.mxu0 0.0
        %1272 = vmatmul.mubr.f32.gmra.mxu0 %v1152
        %v1273 = vpop.f32.mrf.mxu0
        %v1274 = vadd.f32 0.0, %v1273
        %v1275 = vpop.f32.mrf.mxu0
        %1276 = vmatprep.mubr.f32.mxu0 0.0
        %1277 = vmatmul.mubr.f32.gmra.mxu0 %v1155
        %v1278 = vpop.f32.mrf.mxu0
        %v1279 = vadd.f32 0.0, %v1278
        %v1280 = vpop.f32.mrf.mxu0
        %1281 = vmatprep.mubr.f32.mxu0 0.0
        %1282 = vmatmul.mubr.f32.gmra.mxu0 %v1158
        %v1283 = vpop.f32.mrf.mxu0
        %v1284 = vadd.f32 0.0, %v1283
        %v1285 = vpop.f32.mrf.mxu0
        %1286 = vmatprep.mubr.f32.mxu0 0.0
        %1287 = vmatmul.mubr.f32.gmra.mxu0 %v1161
        %v1288 = vpop.f32.mrf.mxu0
        %v1289 = vadd.f32 0.0, %v1288
        %v1290 = vpop.f32.mrf.mxu0
        %1291 = vdwg.mxu0
        %v1292 = vadd.f32 %v1082, %v1254
        %v1293 = vadd.f32 %v1087, %v1259
        %v1294 = vadd.f32 %v1092, %v1264
        %v1295 = vadd.f32 %v1097, %v1269
        %v1296 = vadd.f32 %v1102, %v1274
        %v1297 = vadd.f32 %v1107, %v1279
        %v1298 = vadd.f32 %v1112, %v1284
        %v1299 = vadd.f32 %v1117, %v1289
        %vm1300 = vcmask 523264
        %1301 = vst.msk [vmem:[%s334] sm:$0xff] %vm1300, %v1292
        %1302 = vst.msk [vmem:[%s334 + $0x8] sm:$0xff] %vm1300, %v1293
        %1303 = vst.msk [vmem:[%s334 + $0x10] sm:$0xff] %vm1300, %v1294
        %1304 = vst.msk [vmem:[%s334 + $0x18] sm:$0xff] %vm1300, %v1295
        %1305 = vst.msk [vmem:[%s334 + $0x20] sm:$0xff] %vm1300, %v1296
        %1306 = vst.msk [vmem:[%s334 + $0x28] sm:$0xff] %vm1300, %v1297
        %1307 = vst.msk [vmem:[%s334 + $0x30] sm:$0xff] %vm1300, %v1298
        %1308 = vst.msk [vmem:[%s334 + $0x38] sm:$0xff] %vm1300, %v1299
        %v1309 = vmul.f32 %v1292, 0.17677669
        %v1310 = vmul.f32 %v1293, 0.17677669
        %v1311 = vmul.f32 %v1294, 0.17677669
        %v1312 = vmul.f32 %v1295, 0.17677669
        %v1313 = vmul.f32 %v1296, 0.17677669
        %v1314 = vmul.f32 %v1297, 0.17677669
        %v1315 = vmul.f32 %v1298, 0.17677669
        %v1316 = vmul.f32 %v1299, 0.17677669
        %v1317 = vlaneseq
        %v1318 = vshrl.u32 %v1317, 7
        %v1319 = vadd.s32 %v1318, 8
        %v1320 = vadd.s32 %v1318, 16
        %v1321 = vadd.s32 %v1318, 24
        %v1322 = vadd.s32 %v1318, 32
        %v1323 = vadd.s32 %v1318, 40
        %v1324 = vadd.s32 %v1318, 48
        %v1325 = vadd.s32 %v1318, 56
        %v1326 = vstv %s776
        %v1327 = vadd.s32 %v1326, %v1318
        %v1328 = vadd.s32 %v1326, %v1319
        %v1329 = vadd.s32 %v1326, %v1320
        %v1330 = vadd.s32 %v1326, %v1321
        %v1331 = vadd.s32 %v1326, %v1322
        %v1332 = vadd.s32 %v1326, %v1323
        %v1333 = vadd.s32 %v1326, %v1324
        %v1334 = vadd.s32 %v1326, %v1325
        %v1335 = vlaneseq
        %v1336 = vand.u32 %v1335, 127
        %vm1337 = vcmp.ge.s32.totalorder %v1327, %v1336
        %vm1338 = vcmp.ge.s32.totalorder %v1328, %v1336
        %vm1339 = vcmp.ge.s32.totalorder %v1329, %v1336
        %vm1340 = vcmp.ge.s32.totalorder %v1330, %v1336
        %vm1341 = vcmp.ge.s32.totalorder %v1331, %v1336
        %vm1342 = vcmp.ge.s32.totalorder %v1332, %v1336
        %vm1343 = vcmp.ge.s32.totalorder %v1333, %v1336
        %vm1344 = vcmp.ge.s32.totalorder %v1334, %v1336
        %v1345 = vsel %vm1337, %v1309, -1000000.0
        %v1346 = vsel %vm1338, %v1310, -1000000.0
        %v1347 = vsel %vm1339, %v1311, -1000000.0
        %v1348 = vsel %vm1340, %v1312, -1000000.0
        %v1349 = vsel %vm1341, %v1313, -1000000.0
        %v1350 = vsel %vm1342, %v1314, -1000000.0
        %v1351 = vsel %vm1343, %v1315, -1000000.0
        %v1352 = vsel %vm1344, %v1316, -1000000.0
        %v1353 = vsel %vm1300, %v1345, -inf
        %1354 = vmax.xlane.f32.xlu0 %v1353
        %v1355 = vpop.xlane.xlu0 %1354
        %v1356 = vsel %vm1300, %v1346, -inf
        %1357 = vmax.xlane.f32.xlu0 %v1356
        %v1358 = vpop.xlane.xlu0 %1357
        %v1359 = vsel %vm1300, %v1347, -inf
        %1360 = vmax.xlane.f32.xlu0 %v1359
        %v1361 = vpop.xlane.xlu0 %1360
        %v1362 = vsel %vm1300, %v1348, -inf
        %1363 = vmax.xlane.f32.xlu0 %v1362
        %v1364 = vpop.xlane.xlu0 %1363
        %v1365 = vsel %vm1300, %v1349, -inf
        %1366 = vmax.xlane.f32.xlu0 %v1365
        %v1367 = vpop.xlane.xlu0 %1366
        %v1368 = vsel %vm1300, %v1350, -inf
        %1369 = vmax.xlane.f32.xlu0 %v1368
        %v1370 = vpop.xlane.xlu0 %1369
        %v1371 = vsel %vm1300, %v1351, -inf
        %1372 = vmax.xlane.f32.xlu0 %v1371
        %v1373 = vpop.xlane.xlu0 %1372
        %v1374 = vsel %vm1300, %v1352, -inf
        %1375 = vmax.xlane.f32.xlu0 %v1374
        %v1376 = vpop.xlane.xlu0 %1375
        %v1377 = vsub.f32 %v1345, %v1355
        %v1378 = vsub.f32 %v1346, %v1358
        %v1379 = vsub.f32 %v1347, %v1361
        %v1380 = vsub.f32 %v1348, %v1364
        %v1381 = vsub.f32 %v1349, %v1367
        %v1382 = vsub.f32 %v1350, %v1370
        %v1383 = vsub.f32 %v1351, %v1373
        %v1384 = vsub.f32 %v1352, %v1376
        %v1385 = vmul.f32 %v1377, 1.442695
        %v1386 = vpow.pop %v1385
        %v1387 = vmul.f32 %v1378, 1.442695
        %v1388 = vpow.pop %v1387
        %v1389 = vmul.f32 %v1379, 1.442695
        %v1390 = vpow.pop %v1389
        %v1391 = vmul.f32 %v1380, 1.442695
        %v1392 = vpow.pop %v1391
        %v1393 = vmul.f32 %v1381, 1.442695
        %v1394 = vpow.pop %v1393
        %v1395 = vmul.f32 %v1382, 1.442695
        %v1396 = vpow.pop %v1395
        %v1397 = vmul.f32 %v1383, 1.442695
        %v1398 = vpow.pop %v1397
        %v1399 = vmul.f32 %v1384, 1.442695
        %v1400 = vpow.pop %v1399
        %v1401 = vsel %vm1300, %v1386, 0.0
        %1402 = vadd.xlane.f32.xlu0 %v1401
        %v1403 = vpop.xlane.xlu0 %1402
        %v1404 = vsel %vm1300, %v1388, 0.0
        %1405 = vadd.xlane.f32.xlu0 %v1404
        %v1406 = vpop.xlane.xlu0 %1405
        %v1407 = vsel %vm1300, %v1390, 0.0
        %1408 = vadd.xlane.f32.xlu0 %v1407
        %v1409 = vpop.xlane.xlu0 %1408
        %v1410 = vsel %vm1300, %v1392, 0.0
        %1411 = vadd.xlane.f32.xlu0 %v1410
        %v1412 = vpop.xlane.xlu0 %1411
        %v1413 = vsel %vm1300, %v1394, 0.0
        %1414 = vadd.xlane.f32.xlu0 %v1413
        %v1415 = vpop.xlane.xlu0 %1414
        %v1416 = vsel %vm1300, %v1396, 0.0
        %1417 = vadd.xlane.f32.xlu0 %v1416
        %v1418 = vpop.xlane.xlu0 %1417
        %v1419 = vsel %vm1300, %v1398, 0.0
        %1420 = vadd.xlane.f32.xlu0 %v1419
        %v1421 = vpop.xlane.xlu0 %1420
        %v1422 = vsel %vm1300, %v1400, 0.0
        %1423 = vadd.xlane.f32.xlu0 %v1422
        %v1424 = vpop.xlane.xlu0 %1423
        %v1425 = vld [vmem:[%s361] sm:$0xff]
        %v1426 = vld [vmem:[%s361 + $0x8] sm:$0xff]
        %v1427 = vld [vmem:[%s361 + $0x10] sm:$0xff]
        %v1428 = vld [vmem:[%s361 + $0x18] sm:$0xff]
        %v1429 = vld [vmem:[%s361 + $0x20] sm:$0xff]
        %v1430 = vld [vmem:[%s361 + $0x28] sm:$0xff]
        %v1431 = vld [vmem:[%s361 + $0x30] sm:$0xff]
        %v1432 = vld [vmem:[%s361 + $0x38] sm:$0xff]
        %v1434 = vsel %vm1300, %v1386, 0
        %v1437 = vsel %vm1300, %v1388, 0
        %v1440 = vsel %vm1300, %v1390, 0
        %v1443 = vsel %vm1300, %v1392, 0
        %v1446 = vsel %vm1300, %v1394, 0
        %v1449 = vsel %vm1300, %v1396, 0
        %v1452 = vsel %vm1300, %v1398, 0
        %v1455 = vsel %vm1300, %v1400, 0
        %1457 = vmatprep.subr.mxu0 0.0
        %1458 = vmatpush1.msra.mxu0 0.0
        %1459 = vmatprep.subr.mxu0 0.0
        %1460 = vmatpush1.msra.mxu0 0.0
        %1461 = vmatprep.subr.mxu0 0.0
        %1462 = vmatpush1.msra.mxu0 0.0
        %1463 = vmatprep.subr.mxu0 0.0
        %1464 = vmatpush1.msra.mxu0 0.0
        %1465 = vmatprep.subr.mxu0 0.0
        %1466 = vmatpush1.msra.mxu0 0.0
        %1467 = vmatprep.subr.mxu0 0.0
        %1468 = vmatpush1.msra.mxu0 0.0
        %1469 = vmatprep.subr.mxu0 0.0
        %1470 = vmatpush1.msra.mxu0 0.0
        %1471 = vmatprep.subr.mxu0 0.0
        %1472 = vmatpush1.msra.mxu0 0.0
        %1473 = vmatprep.subr.mxu0 0.0
        %1474 = vmatpush1.msra.mxu0 %v1432
        %1475 = vmatprep.subr.mxu0 0.0
        %1476 = vmatpush1.msra.mxu0 %v1431
        %1477 = vmatprep.subr.mxu0 0.0
        %1478 = vmatpush1.msra.mxu0 %v1430
        %1479 = vmatprep.subr.mxu0 0.0
        %1480 = vmatpush1.msra.mxu0 %v1429
        %1481 = vmatprep.subr.mxu0 0.0
        %1482 = vmatpush1.msra.mxu0 %v1428
        %1483 = vmatprep.subr.mxu0 0.0
        %1484 = vmatpush1.msra.mxu0 %v1427
        %1485 = vmatprep.subr.mxu0 0.0
        %1486 = vmatpush1.msra.mxu0 %v1426
        %1487 = vmatprep.subr.mxu0 0.0
        %1488 = vmatpush1.msra.mxu0 %v1425
        %1489 = vmatprep.subr.mxu0 0.0
        %1490 = vmatpush2.msra.mxu0 0.0
        %1491 = vmatprep.subr.mxu0 0.0
        %1492 = vmatpush2.msra.mxu0 0.0
        %1493 = vmatprep.subr.mxu0 0.0
        %1494 = vmatpush2.msra.mxu0 0.0
        %1495 = vmatprep.subr.mxu0 0.0
        %1496 = vmatpush2.msra.mxu0 0.0
        %1497 = vmatprep.subr.mxu0 0.0
        %1498 = vmatpush2.msra.mxu0 0.0
        %1499 = vmatprep.subr.mxu0 0.0
        %1500 = vmatpush2.msra.mxu0 0.0
        %1501 = vmatprep.subr.mxu0 0.0
        %1502 = vmatpush2.msra.mxu0 0.0
        %1503 = vmatprep.subr.mxu0 0.0
        %1504 = vmatpush2.msra.mxu0 0.0
        %1505 = vmatprep.subr.mxu0 0.0
        %1506 = vmatpush2.msra.mxu0 0.0
        %1507 = vmatprep.subr.mxu0 0.0
        %1508 = vmatpush2.msra.mxu0 0.0
        %1509 = vmatprep.subr.mxu0 0.0
        %1510 = vmatpush2.msra.mxu0 0.0
        %1511 = vmatprep.subr.mxu0 0.0
        %1512 = vmatpush2.msra.mxu0 0.0
        %1513 = vmatprep.subr.mxu0 0.0
        %1514 = vmatpush2.msra.mxu0 0.0
        %1515 = vmatprep.subr.mxu0 0.0
        %1516 = vmatpush2.msra.mxu0 0.0
        %1517 = vmatprep.subr.mxu0 0.0
        %1518 = vmatpush2.msra.mxu0 0.0
        %1519 = vmatprep.subr.mxu0 0.0
        %1520 = vmatpush2.msra.mxu0 0.0
        %1521 = vmatprep.mubr.f32.mxu0 0.0
        %1522 = vmatmul.mubr.f32.gmra.mxu0 %v1434
        %v1523 = vpop.f32.mrf.mxu0
        %v1524 = vadd.f32 0.0, %v1523
        %v1525 = vpop.f32.mrf.mxu0
        %1526 = vmatprep.mubr.f32.mxu0 0.0
        %1527 = vmatmul.mubr.f32.gmra.mxu0 %v1437
        %v1528 = vpop.f32.mrf.mxu0
        %v1529 = vadd.f32 0.0, %v1528
        %v1530 = vpop.f32.mrf.mxu0
        %1531 = vmatprep.mubr.f32.mxu0 0.0
        %1532 = vmatmul.mubr.f32.gmra.mxu0 %v1440
        %v1533 = vpop.f32.mrf.mxu0
        %v1534 = vadd.f32 0.0, %v1533
        %v1535 = vpop.f32.mrf.mxu0
        %1536 = vmatprep.mubr.f32.mxu0 0.0
        %1537 = vmatmul.mubr.f32.gmra.mxu0 %v1443
        %v1538 = vpop.f32.mrf.mxu0
        %v1539 = vadd.f32 0.0, %v1538
        %v1540 = vpop.f32.mrf.mxu0
        %1541 = vmatprep.mubr.f32.mxu0 0.0
        %1542 = vmatmul.mubr.f32.gmra.mxu0 %v1446
        %v1543 = vpop.f32.mrf.mxu0
        %v1544 = vadd.f32 0.0, %v1543
        %v1545 = vpop.f32.mrf.mxu0
        %1546 = vmatprep.mubr.f32.mxu0 0.0
        %1547 = vmatmul.mubr.f32.gmra.mxu0 %v1449
        %v1548 = vpop.f32.mrf.mxu0
        %v1549 = vadd.f32 0.0, %v1548
        %v1550 = vpop.f32.mrf.mxu0
        %1551 = vmatprep.mubr.f32.mxu0 0.0
        %1552 = vmatmul.mubr.f32.gmra.mxu0 %v1452
        %v1553 = vpop.f32.mrf.mxu0
        %v1554 = vadd.f32 0.0, %v1553
        %v1555 = vpop.f32.mrf.mxu0
        %1556 = vmatprep.mubr.f32.mxu0 0.0
        %1557 = vmatmul.mubr.f32.gmra.mxu0 %v1455
        %v1558 = vpop.f32.mrf.mxu0
        %v1559 = vadd.f32 0.0, %v1558
        %v1560 = vpop.f32.mrf.mxu0
        %1561 = vdwg.mxu0
        %v1562 = vrcp.pop %v1403
        %v1563 = vrcp.pop %v1406
        %v1564 = vrcp.pop %v1409
        %v1565 = vrcp.pop %v1412
        %v1566 = vrcp.pop %v1415
        %v1567 = vrcp.pop %v1418
        %v1568 = vrcp.pop %v1421
        %v1569 = vrcp.pop %v1424
        %v1570 = vmul.f32 %v1403, %v1562
        %v1571 = vmul.f32 %v1406, %v1563
        %v1572 = vmul.f32 %v1409, %v1564
        %v1573 = vmul.f32 %v1412, %v1565
        %v1574 = vmul.f32 %v1415, %v1566
        %v1575 = vmul.f32 %v1418, %v1567
        %v1576 = vmul.f32 %v1421, %v1568
        %v1577 = vmul.f32 %v1424, %v1569
        %v1578 = vsub.f32 2.0, %v1570
        %v1579 = vsub.f32 2.0, %v1571
        %v1580 = vsub.f32 2.0, %v1572
        %v1581 = vsub.f32 2.0, %v1573
        %v1582 = vsub.f32 2.0, %v1574
        %v1583 = vsub.f32 2.0, %v1575
        %v1584 = vsub.f32 2.0, %v1576
        %v1585 = vsub.f32 2.0, %v1577
        %v1586 = vmul.f32 %v1562, %v1578
        %v1587 = vmul.f32 %v1563, %v1579
        %v1588 = vmul.f32 %v1564, %v1580
        %v1589 = vmul.f32 %v1565, %v1581
        %v1590 = vmul.f32 %v1566, %v1582
        %v1591 = vmul.f32 %v1567, %v1583
        %v1592 = vmul.f32 %v1568, %v1584
        %v1593 = vmul.f32 %v1569, %v1585
        %v1594 = vmul.f32 %v1524, %v1586
        %v1595 = vmul.f32 %v1529, %v1587
        %v1596 = vmul.f32 %v1534, %v1588
        %v1597 = vmul.f32 %v1539, %v1589
        %v1598 = vmul.f32 %v1544, %v1590
        %v1599 = vmul.f32 %v1549, %v1591
        %v1600 = vmul.f32 %v1554, %v1592
        %v1601 = vmul.f32 %v1559, %v1593
        %1602 = vst.msk [vmem:[%s374] sm:$0xff] %vm813, %v1594
        %1603 = vst.msk [vmem:[%s374 + $0x8] sm:$0xff] %vm813, %v1595
        %1604 = vst.msk [vmem:[%s374 + $0x10] sm:$0xff] %vm813, %v1596
        %1605 = vst.msk [vmem:[%s374 + $0x18] sm:$0xff] %vm813, %v1597
        %1606 = vst.msk [vmem:[%s374 + $0x20] sm:$0xff] %vm813, %v1598
        %1607 = vst.msk [vmem:[%s374 + $0x28] sm:$0xff] %vm813, %v1599
        %1608 = vst.msk [vmem:[%s374 + $0x30] sm:$0xff] %vm813, %v1600
        %1609 = vst.msk [vmem:[%s374 + $0x38] sm:$0xff] %vm813, %v1601
        %s1610 = smul.u32 8, %s28
        %p1611 = scmp.lt.s32.totalorder %s26, 1
        %s1612 = scalar_select %p1611, %s26, 1
        %p1613 = scmp.lt.s32.totalorder %s27, 3
        %s1614 = scalar_select %p1613, %s27, 3
        %p1615 = scmp.lt.s32.totalorder %s1610, 7
        %s1616 = scalar_select %p1615, %s1610, 7
        %s1617 = smul.addr %s1614, 8
        %s1618 = sadd.s32 %s1616, %s1617
        %s1619 = smul.addr %s1612, 32
        %s1620 = sadd.s32 %s1618, %s1619
        %s1621 = smul.addr %s1620, 8
        %s1622 = scalar_lea.vmem %s4, %s1621
        %s1623 = sand.u32 %s187, 1
        %s1624 = scalar_lea.sflag [#allocation4], %s1623
        %s1625 = sand.u32 %s187, 1
        %s1626 = smul.addr %s1625, 64
        %s1627 = scalar_lea.vmem [#allocation6], %s1626
        // Predicated region
        $region45: #{tpu_custom_call.1} parent=35 // pred_check
          %p1628 = pneg %p167
        $region46: #{tpu_custom_call.1} parent=35 // pred_check_branch
          %1630 = sbr.rel (%p1628) target = $region48
        $region47: #{tpu_custom_call.1} parent=35 // pred_region
          %s1631 = smul.u32 8, %s28
        $region48: #{tpu_custom_call.1} parent=35 // pred_fallthru
          _
        // Predicated region
        $region49: #{tpu_custom_call.1} parent=35 // pred_check
          %p1632 = pneg %p197
        $region50: #{tpu_custom_call.1} parent=35 // pred_check_branch
          %1634 = sbr.rel (%p1632) target = $region52
        $region51: #{tpu_custom_call.1} parent=35 // pred_region
          %s1635 = smul.u32 8, %s28
          %s1637 = ssub.s32 1024, 1024
          %1638 = vsyncadd %s1624, %s1637
          %s1639 = smul.addr %s27, 8
          %s1640 = sadd.s32 %s1635, %s1639
          %s1641 = smul.addr %s26, 32
          %s1642 = sadd.s32 %s1640, %s1641
          %s1643 = smul.addr %s1642, 128
          %s1644 = scalar_lea.hbm %s5, %s1643
          %s1645 = sshll.u32 %s1627, 4
          %s1646 = int_to_ptr.vmem [resolvable:$true] %s1645
          %1651 = dma.vmem_to_hbm [thread:$0]  %s1646, 1024, %s1644, %s1624, 128, 128, 8
        $region52: #{tpu_custom_call.1} parent=35 // pred_fallthru
          _
      $region36: #{tpu_custom_call.1} parent=5 // pred_fallthru
        _
      %p1652 = scmp.le.s32.totalorder 2, %s16
      // Predicated region
      $region53: #{tpu_custom_call.1} parent=5 // pred_check
        %p1653 = pneg %p1652
      $region54: #{tpu_custom_call.1} parent=5 // pred_check_branch
        %1655 = sbr.rel (%p1653) target = $region56
      $region55: #{tpu_custom_call.1} parent=5 // pred_region
        %s1656 = ssub.s32 %s16, 2
        // Predicated region
        $region57: #{tpu_custom_call.1} parent=55 // pred_check
          %p1657 = pneg %p173
        $region58: #{tpu_custom_call.1} parent=55 // pred_check_branch
          %1659 = sbr.rel (%p1657) target = $region60
        $region59: #{tpu_custom_call.1} parent=55 // pred_region
          %s1660 = smul.u32 8, %s31
          %p1661 = scmp.lt.s32.totalorder %s29, 1
          %s1662 = scalar_select %p1661, %s29, 1
          %p1663 = scmp.lt.s32.totalorder %s30, 3
          %s1664 = scalar_select %p1663, %s30, 3
          %p1665 = scmp.lt.s32.totalorder %s1660, 7
          %s1666 = scalar_select %p1665, %s1660, 7
          %s1667 = smul.addr %s1664, 8
          %s1668 = sadd.s32 %s1666, %s1667
          %s1669 = smul.addr %s1662, 32
          %s1670 = sadd.s32 %s1668, %s1669
          %s1671 = smul.addr %s1670, 8
          %s1672 = scalar_lea.vmem %s4, %s1671
        $region60: #{tpu_custom_call.1} parent=55 // pred_fallthru
          _
        // Predicated region
        $region61: #{tpu_custom_call.1} parent=55 // pred_check
          %p1673 = pneg %p203
        $region62: #{tpu_custom_call.1} parent=55 // pred_check_branch
          %1675 = sbr.rel (%p1673) target = $region64
        $region63: #{tpu_custom_call.1} parent=55 // pred_region
          %s1676 = sand.u32 %s188, 1
          %s1677 = scalar_lea.sflag [#allocation4], %s1676
          %s1678 = sand.u32 %s188, 1
          %s1679 = smul.addr %s1678, 64
          %s1680 = scalar_lea.vmem [#allocation6], %s1679
          %1681 = dma.done %s1677, 1024
        $region64: #{tpu_custom_call.1} parent=55 // pred_fallthru
          _
      $region56: #{tpu_custom_call.1} parent=5 // pred_fallthru
        _
    $region6: #{tpu_custom_call.1} parent=1 // loop_footer
      %s20 = sadd.s32 1, %s16
    $region7: #{tpu_custom_call.1} parent=1 // loop_footer_branch
      %15 = sbr.rel target = $region3
    $region8: #{tpu_custom_call.1} parent=1 // loop_exit
      _
    %1682 = vsyncpa [#allocation4], 1
    %s1683 = scalar_lea.sflag [#allocation4], 1
    %1684 = vsyncpa %s1683, 1
    %1685 = vsyncpa [#allocation5], 1
    %s1686 = scalar_lea.sflag [#allocation5], 1
    %1687 = vsyncpa %s1686, 1

</llo_original>
